<compile_context>
chip_gen: v6e
topology: v6e:2x2x1
jax: 0.10.0
libtpu: 0.0.40
codegen_flags: <defaults>
</compile_context>

<pallas_src>
import jax
import jax.numpy as jnp
from jax import lax
from jax.experimental import pallas as pl
from jax.experimental.pallas import tpu as pltpu


def _log_sigmoid(x):
    # Numerically stable log(sigmoid(x)) = min(x, 0) - log(1 + exp(-|x|)),
    # matching torch.nn.LogSigmoid.
    return jnp.minimum(x, 0.0) - jnp.log(1.0 + jnp.exp(-jnp.abs(x)))


def _skipgram_neg_kernel(
    c_idx_ref,    # (Bt, 1) int32  VMEM
    o_idx_ref,    # (Bt, 1) int32  VMEM
    n_idx_ref,    # (Bt, K) int32  VMEM
    emb_c_ref,    # (V, E)  f32    VMEM (resident, constant block index)
    emb_o_ref,    # (V, E)  f32    VMEM (resident, constant block index)
    out_ref,      # (1, 8, 128) f32 per-block partial-sum slab (lane dense)
):
    V, E = emb_c_ref.shape
    block_b = c_idx_ref.shape[0]
    num_neg = n_idx_ref.shape[1]

    # ---- Vectorized one-hot / count construction (VPU) --------------------
    vocab_ids = lax.broadcasted_iota(jnp.int32, (block_b, V), 1)      # (Bt, V)
    onehot_c = (vocab_ids == c_idx_ref[...]).astype(jnp.float32)      # (Bt, V)
    onehot_o = (vocab_ids == o_idx_ref[...]).astype(jnp.float32)      # (Bt, V)

    n_idx = n_idx_ref[...]                                            # (Bt, K)
    counts = (vocab_ids == n_idx[:, 0:1]).astype(jnp.float32)
    for k in range(1, num_neg):                                       # K static: unrolled
        counts = counts + (vocab_ids == n_idx[:, k:k + 1]).astype(jnp.float32)

    # ---- Fused embedding gather on the MXU --------------------------------
    emb_c = emb_c_ref[...]
    emb_o = emb_o_ref[...]
    hi = lax.Precision.HIGHEST  # exact f32 gather (one-hot operand is exact)
    c = jnp.dot(onehot_c, emb_c, preferred_element_type=jnp.float32, precision=hi)
    o = jnp.dot(onehot_o, emb_o, preferred_element_type=jnp.float32, precision=hi)
    nsum = jnp.dot(counts, emb_o, preferred_element_type=jnp.float32, precision=hi)

    # ---- Loss (two separate lane reduces; no concatenate) ------------------
    uovc = jnp.sum(o * c, axis=-1, keepdims=True)           # (Bt, 1)  <outside, center>
    ukvc_sum = -jnp.sum(nsum * c, axis=-1, keepdims=True)   # (Bt, 1)  -<sum_k neg_k, center>
    loss = _log_sigmoid(uovc) + _log_sigmoid(ukvc_sum)      # (Bt, 1)

    # Lane-dense per-block partial sum; final -mean happens outside the kernel.
    out_ref[...] = jnp.full(out_ref.shape, jnp.sum(loss), dtype=out_ref.dtype)


def skipgram_neg_forward(emb_center, emb_outside, center, outside, negative,
                         *, block_b=None):
    """emb_center/emb_outside: (V, E) f32 tables; center/outside: (B, 1) int;
    negative: (B, K) int.  Returns scalar -mean(loss)."""
    V, E = emb_center.shape
    B, K = negative.shape

    c_idx = center.reshape(B, 1).astype(jnp.int32)
    o_idx = outside.reshape(B, 1).astype(jnp.int32)
    n_idx = negative.astype(jnp.int32)

    emb_center = emb_center.astype(jnp.float32)
    emb_outside = emb_outside.astype(jnp.float32)

    if block_b is None:
        block_b = B if B <= 512 else 512
    assert B % block_b == 0, "batch size must be divisible by the batch block"
    num_blocks = B // block_b

    # VMEM budget: two resident (V, E) tables (double-buffered by Pallas) plus
    # the per-block (Bt, V) one-hot / (Bt, E) working set, with headroom.
    needed = 2 * 2 * V * E * 4 + 8 * block_b * (V + E + 128) * 4 + (2 << 20)
    vmem_limit = int(min(max(needed, 16 << 20), 64 << 20))

    partial = pl.pallas_call(
        _skipgram_neg_kernel,
        out_shape=jax.ShapeDtypeStruct((num_blocks, 8, 128), jnp.float32),
        grid=(num_blocks,),
        in_specs=[
            pl.BlockSpec((block_b, 1), lambda i: (i, 0)),
            pl.BlockSpec((block_b, 1), lambda i: (i, 0)),
            pl.BlockSpec((block_b, K), lambda i: (i, 0)),
            # Whole tables resident in VMEM; constant block index -> DMA'd once.
            pl.BlockSpec((V, E), lambda i: (0, 0)),
            pl.BlockSpec((V, E), lambda i: (0, 0)),
        ],
        out_specs=pl.BlockSpec((1, 8, 128), lambda i: (i, 0, 0)),
        compiler_params=pltpu.CompilerParams(
            dimension_semantics=("parallel",),
            vmem_limit_bytes=vmem_limit,
        ),
    )(c_idx, o_idx, n_idx, emb_center, emb_outside)

    return -jnp.sum(partial[:, 0, 0]) / jnp.float32(B)


def _reference_forward(emb_center, emb_outside, center, outside, negative):
    # Pure-JAX reference mirroring the PyTorch forward, for sanity checking.
    ce = jnp.take(emb_center, center[:, 0], axis=0)         # (B, E)
    oe = jnp.take(emb_outside, outside[:, 0], axis=0)       # (B, E)
    ne = jnp.take(emb_outside, negative, axis=0)             # (B, K, E)
    uovc = jnp.sum(oe * ce, axis=-1, keepdims=True)          # (B, 1)
    ukvc = -jnp.sum(ne * ce[:, None, :], axis=-1)            # (B, K)
    ukvc_sum = jnp.sum(ukvc, axis=-1, keepdims=True)         # (B, 1)
    loss = jax.nn.log_sigmoid(uovc) + jax.nn.log_sigmoid(ukvc_sum)
    return -jnp.mean(loss)


if __name__ == "__main__":
    VOC_SIZE = 50
    EMB_SIZE = 32
    BATCH = 8
    NUM_NEG = 8

    key = jax.random.PRNGKey(0)
    k_ec, k_eo, k_c, k_o, k_n = jax.random.split(key, 5)

    # nn.Embedding default init: N(0, 1)
    emb_center = jax.random.normal(k_ec, (VOC_SIZE, EMB_SIZE), dtype=jnp.float32)
    emb_outside = jax.random.normal(k_eo, (VOC_SIZE, EMB_SIZE), dtype=jnp.float32)

    center = jax.random.randint(k_c, (BATCH, 1), 0, VOC_SIZE, dtype=jnp.int32)
    outside = jax.random.randint(k_o, (BATCH, 1), 0, VOC_SIZE, dtype=jnp.int32)
    negative = jax.random.randint(k_n, (BATCH, NUM_NEG), 0, VOC_SIZE, dtype=jnp.int32)

    loss = jax.block_until_ready(
        skipgram_neg_forward(emb_center, emb_outside, center, outside, negative))

    ref = jax.block_until_ready(
        _reference_forward(emb_center, emb_outside, center, outside, negative))

    # With precision=HIGHEST the gather is exact f32 (observed agreement ~1e-6);
    # the tolerance leaves margin for any MXU reduced-precision pass fallback.
    assert jnp.allclose(loss, ref, rtol=2e-2, atol=2e-2), (loss, ref)

    print("KERNEL_OK")
</pallas_src>

<mosaic_0001>
module attributes {stable_mosaic.version = 11 : i64} {
  func.func @_skipgram_neg_kernel(%arg0: i32, %arg1: memref<8x1xi32, #tpu.memory_space<vmem>>, %arg2: memref<8x1xi32, #tpu.memory_space<vmem>>, %arg3: memref<8x8xi32, #tpu.memory_space<vmem>>, %arg4: memref<50x32xf32, #tpu.memory_space<vmem>>, %arg5: memref<50x32xf32, #tpu.memory_space<vmem>>, %arg6: memref<1x8x128xf32, #tpu.memory_space<vmem>>) attributes {dimension_semantics = [#tpu.dimension_semantics<parallel>], iteration_bounds = array<i64: 1>, scalar_prefetch = 0 : i64, scratch_operands = 0 : i64, tpu.core_type = #tpu.core_type<tc>, window_params = [{transform_indices = @transform_0, window_bounds = array<i64: 8, 1>}, {transform_indices = @transform_1, window_bounds = array<i64: 8, 1>}, {transform_indices = @transform_2, window_bounds = array<i64: 8, 8>}, {pipeline_mode = #tpu.pipeline_mode<synchronous>, transform_indices = @transform_3, window_bounds = array<i64: 50, 32>}, {pipeline_mode = #tpu.pipeline_mode<synchronous>, transform_indices = @transform_4, window_bounds = array<i64: 50, 32>}, {transform_indices = @transform_5, window_bounds = array<i64: 1, 8, 128>}]} {
    %0 = tpu.iota {dimensions = array<i32: 1>} : vector<8x50xi32>
    %c0 = arith.constant 0 : index
    %c0_0 = arith.constant 0 : index
    %1 = vector.load %arg1[%c0, %c0_0] : memref<8x1xi32, #tpu.memory_space<vmem>>, vector<8x1xi32>
    %2 = vector.broadcast %1 : vector<8x1xi32> to vector<8x50xi32>
    %3 = arith.cmpi eq, %0, %2 : vector<8x50xi32>
    %4 = arith.extui %3 : vector<8x50xi1> to vector<8x50xi32>
    %5 = arith.sitofp %4 : vector<8x50xi32> to vector<8x50xf32>
    %c0_1 = arith.constant 0 : index
    %c0_2 = arith.constant 0 : index
    %6 = vector.load %arg2[%c0_1, %c0_2] : memref<8x1xi32, #tpu.memory_space<vmem>>, vector<8x1xi32>
    %7 = vector.broadcast %6 : vector<8x1xi32> to vector<8x50xi32>
    %8 = arith.cmpi eq, %0, %7 : vector<8x50xi32>
    %9 = arith.extui %8 : vector<8x50xi1> to vector<8x50xi32>
    %10 = arith.sitofp %9 : vector<8x50xi32> to vector<8x50xf32>
    %c0_3 = arith.constant 0 : index
    %c0_4 = arith.constant 0 : index
    %11 = vector.load %arg3[%c0_3, %c0_4] : memref<8x8xi32, #tpu.memory_space<vmem>>, vector<8x8xi32>
    %12 = vector.extract_strided_slice %11 {offsets = [0, 0], sizes = [8, 1], strides = [1, 1]} : vector<8x8xi32> to vector<8x1xi32>
    %13 = vector.broadcast %12 : vector<8x1xi32> to vector<8x50xi32>
    %14 = arith.cmpi eq, %0, %13 : vector<8x50xi32>
    %15 = arith.extui %14 : vector<8x50xi1> to vector<8x50xi32>
    %16 = arith.sitofp %15 : vector<8x50xi32> to vector<8x50xf32>
    %17 = vector.extract_strided_slice %11 {offsets = [0, 1], sizes = [8, 1], strides = [1, 1]} : vector<8x8xi32> to vector<8x1xi32>
    %18 = vector.broadcast %17 : vector<8x1xi32> to vector<8x50xi32>
    %19 = arith.cmpi eq, %0, %18 : vector<8x50xi32>
    %20 = arith.extui %19 : vector<8x50xi1> to vector<8x50xi32>
    %21 = arith.sitofp %20 : vector<8x50xi32> to vector<8x50xf32>
    %22 = arith.addf %16, %21 : vector<8x50xf32>
    %23 = vector.extract_strided_slice %11 {offsets = [0, 2], sizes = [8, 1], strides = [1, 1]} : vector<8x8xi32> to vector<8x1xi32>
    %24 = vector.broadcast %23 : vector<8x1xi32> to vector<8x50xi32>
    %25 = arith.cmpi eq, %0, %24 : vector<8x50xi32>
    %26 = arith.extui %25 : vector<8x50xi1> to vector<8x50xi32>
    %27 = arith.sitofp %26 : vector<8x50xi32> to vector<8x50xf32>
    %28 = arith.addf %22, %27 : vector<8x50xf32>
    %29 = vector.extract_strided_slice %11 {offsets = [0, 3], sizes = [8, 1], strides = [1, 1]} : vector<8x8xi32> to vector<8x1xi32>
    %30 = vector.broadcast %29 : vector<8x1xi32> to vector<8x50xi32>
    %31 = arith.cmpi eq, %0, %30 : vector<8x50xi32>
    %32 = arith.extui %31 : vector<8x50xi1> to vector<8x50xi32>
    %33 = arith.sitofp %32 : vector<8x50xi32> to vector<8x50xf32>
    %34 = arith.addf %28, %33 : vector<8x50xf32>
    %35 = vector.extract_strided_slice %11 {offsets = [0, 4], sizes = [8, 1], strides = [1, 1]} : vector<8x8xi32> to vector<8x1xi32>
    %36 = vector.broadcast %35 : vector<8x1xi32> to vector<8x50xi32>
    %37 = arith.cmpi eq, %0, %36 : vector<8x50xi32>
    %38 = arith.extui %37 : vector<8x50xi1> to vector<8x50xi32>
    %39 = arith.sitofp %38 : vector<8x50xi32> to vector<8x50xf32>
    %40 = arith.addf %34, %39 : vector<8x50xf32>
    %41 = vector.extract_strided_slice %11 {offsets = [0, 5], sizes = [8, 1], strides = [1, 1]} : vector<8x8xi32> to vector<8x1xi32>
    %42 = vector.broadcast %41 : vector<8x1xi32> to vector<8x50xi32>
    %43 = arith.cmpi eq, %0, %42 : vector<8x50xi32>
    %44 = arith.extui %43 : vector<8x50xi1> to vector<8x50xi32>
    %45 = arith.sitofp %44 : vector<8x50xi32> to vector<8x50xf32>
    %46 = arith.addf %40, %45 : vector<8x50xf32>
    %47 = vector.extract_strided_slice %11 {offsets = [0, 6], sizes = [8, 1], strides = [1, 1]} : vector<8x8xi32> to vector<8x1xi32>
    %48 = vector.broadcast %47 : vector<8x1xi32> to vector<8x50xi32>
    %49 = arith.cmpi eq, %0, %48 : vector<8x50xi32>
    %50 = arith.extui %49 : vector<8x50xi1> to vector<8x50xi32>
    %51 = arith.sitofp %50 : vector<8x50xi32> to vector<8x50xf32>
    %52 = arith.addf %46, %51 : vector<8x50xf32>
    %53 = vector.extract_strided_slice %11 {offsets = [0, 7], sizes = [8, 1], strides = [1, 1]} : vector<8x8xi32> to vector<8x1xi32>
    %54 = vector.broadcast %53 : vector<8x1xi32> to vector<8x50xi32>
    %55 = arith.cmpi eq, %0, %54 : vector<8x50xi32>
    %56 = arith.extui %55 : vector<8x50xi1> to vector<8x50xi32>
    %57 = arith.sitofp %56 : vector<8x50xi32> to vector<8x50xf32>
    %58 = arith.addf %52, %57 : vector<8x50xf32>
    %c0_5 = arith.constant 0 : index
    %c0_6 = arith.constant 0 : index
    %59 = vector.load %arg4[%c0_5, %c0_6] : memref<50x32xf32, #tpu.memory_space<vmem>>, vector<50x32xf32>
    %c0_7 = arith.constant 0 : index
    %c0_8 = arith.constant 0 : index
    %60 = vector.load %arg5[%c0_7, %c0_8] : memref<50x32xf32, #tpu.memory_space<vmem>>, vector<50x32xf32>
    %cst = arith.constant dense<0.000000e+00> : vector<8x32xf32>
    %61 = tpu.matmul %5, %59, %cst {dimension_numbers = #tpu.dot_dimension_numbers<[1], [0], [0], [1], [0, 0, 1, 1], [], []>, precision = #tpu.contract_precision<fp32>} : vector<8x50xf32>, vector<50x32xf32>, vector<8x32xf32> -> vector<8x32xf32>
    %cst_9 = arith.constant dense<0.000000e+00> : vector<8x32xf32>
    %62 = tpu.matmul %10, %60, %cst_9 {dimension_numbers = #tpu.dot_dimension_numbers<[1], [0], [0], [1], [0, 0, 1, 1], [], []>, precision = #tpu.contract_precision<fp32>} : vector<8x50xf32>, vector<50x32xf32>, vector<8x32xf32> -> vector<8x32xf32>
    %cst_10 = arith.constant dense<0.000000e+00> : vector<8x32xf32>
    %63 = tpu.matmul %58, %60, %cst_10 {dimension_numbers = #tpu.dot_dimension_numbers<[1], [0], [0], [1], [0, 0, 1, 1], [], []>, precision = #tpu.contract_precision<fp32>} : vector<8x50xf32>, vector<50x32xf32>, vector<8x32xf32> -> vector<8x32xf32>
    %64 = arith.mulf %62, %61 : vector<8x32xf32>
    %cst_11 = arith.constant dense<0.000000e+00> : vector<8xf32>
    %65 = vector.multi_reduction <add>, %64, %cst_11 [1] : vector<8x32xf32> to vector<8xf32>
    %66 = vector.shape_cast %65 : vector<8xf32> to vector<8x1xf32>
    %67 = arith.mulf %63, %61 : vector<8x32xf32>
    %cst_12 = arith.constant dense<0.000000e+00> : vector<8xf32>
    %68 = vector.multi_reduction <add>, %67, %cst_12 [1] : vector<8x32xf32> to vector<8xf32>
    %69 = vector.shape_cast %68 : vector<8xf32> to vector<8x1xf32>
    %cst_13 = arith.constant 0.000000e+00 : f32
    %70 = vector.broadcast %cst_13 : f32 to vector<8x1xf32>
    %71 = arith.subf %70, %69 : vector<8x1xf32>
    %cst_14 = arith.constant 0.000000e+00 : f32
    %72 = vector.broadcast %cst_14 : f32 to vector<8x1xf32>
    %73 = arith.minimumf %66, %72 : vector<8x1xf32>
    %74 = math.absf %66 : vector<8x1xf32>
    %cst_15 = arith.constant 0.000000e+00 : f32
    %75 = vector.broadcast %cst_15 : f32 to vector<8x1xf32>
    %76 = arith.subf %75, %74 : vector<8x1xf32>
    %77 = math.exp %76 : vector<8x1xf32>
    %cst_16 = arith.constant 1.000000e+00 : f32
    %78 = vector.broadcast %cst_16 : f32 to vector<8x1xf32>
    %79 = arith.addf %78, %77 : vector<8x1xf32>
    %80 = math.log %79 : vector<8x1xf32>
    %81 = arith.subf %73, %80 : vector<8x1xf32>
    %cst_17 = arith.constant 0.000000e+00 : f32
    %82 = vector.broadcast %cst_17 : f32 to vector<8x1xf32>
    %83 = arith.minimumf %71, %82 : vector<8x1xf32>
    %84 = math.absf %71 : vector<8x1xf32>
    %cst_18 = arith.constant 0.000000e+00 : f32
    %85 = vector.broadcast %cst_18 : f32 to vector<8x1xf32>
    %86 = arith.subf %85, %84 : vector<8x1xf32>
    %87 = math.exp %86 : vector<8x1xf32>
    %cst_19 = arith.constant 1.000000e+00 : f32
    %88 = vector.broadcast %cst_19 : f32 to vector<8x1xf32>
    %89 = arith.addf %88, %87 : vector<8x1xf32>
    %90 = math.log %89 : vector<8x1xf32>
    %91 = arith.subf %83, %90 : vector<8x1xf32>
    %92 = arith.addf %81, %91 : vector<8x1xf32>
    %93 = vector.shape_cast %92 : vector<8x1xf32> to vector<1x8x1xf32>
    %cst_20 = arith.constant dense<0.000000e+00> : vector<1xf32>
    %94 = vector.multi_reduction <add>, %93, %cst_20 [1, 2] : vector<1x8x1xf32> to vector<1xf32>
    %95 = vector.shape_cast %94 : vector<1xf32> to vector<1x1x1xf32>
    %96 = vector.extract %95[0, 0, 0] : f32 from vector<1x1x1xf32>
    %97 = vector.broadcast %96 : f32 to vector<1x8x128xf32>
    %c0_21 = arith.constant 0 : index
    %c0_22 = arith.constant 0 : index
    %c0_23 = arith.constant 0 : index
    %98 = vector.load %arg6[%c0_21, %c0_22, %c0_23] : memref<1x8x128xf32, #tpu.memory_space<vmem>>, vector<1x8x128xf32>
    tpu.vector_store %arg6[%c0_21, %c0_22, %c0_23], %97 {strides = array<i32>} : memref<1x8x128xf32, #tpu.memory_space<vmem>>, vector<1x8x128xf32>,
    return
  }
  func.func @transform_0(%arg0: i32) -> (i32, i32) {
    %c0_i32 = arith.constant 0 : i32
    %c0_i32_0 = arith.constant 0 : i32
    return %arg0, %c0_i32 : i32, i32
  }
  func.func @transform_1(%arg0: i32) -> (i32, i32) {
    %c0_i32 = arith.constant 0 : i32
    %c0_i32_0 = arith.constant 0 : i32
    return %arg0, %c0_i32 : i32, i32
  }
  func.func @transform_2(%arg0: i32) -> (i32, i32) {
    %c0_i32 = arith.constant 0 : i32
    %c0_i32_0 = arith.constant 0 : i32
    return %arg0, %c0_i32 : i32, i32
  }
  func.func @transform_3(%arg0: i32) -> (i32, i32) {
    %c0_i32 = arith.constant 0 : i32
    %c0_i32_0 = arith.constant 0 : i32
    %c0_i32_1 = arith.constant 0 : i32
    return %c0_i32, %c0_i32_0 : i32, i32
  }
  func.func @transform_4(%arg0: i32) -> (i32, i32) {
    %c0_i32 = arith.constant 0 : i32
    %c0_i32_0 = arith.constant 0 : i32
    %c0_i32_1 = arith.constant 0 : i32
    return %c0_i32, %c0_i32_0 : i32, i32
  }
  func.func @transform_5(%arg0: i32) -> (i32, i32, i32) {
    %c0_i32 = arith.constant 0 : i32
    %c0_i32_0 = arith.constant 0 : i32
    %c0_i32_1 = arith.constant 0 : i32
    return %arg0, %c0_i32, %c0_i32_0 : i32, i32, i32
  }
}

</mosaic_0001>

<llo_original>
// kernel: tpu_custom_call.1
$region0: #{tpu_custom_call.1}
  #allocation0 [shape = 'u32[]', space=smem, size = 0x4, offset = 0x4, fixed_abs, tag = 'smem constant byte address 0x4 - core index']
  #allocation1 [shape = 'u32[144,128]{1,0:T(1,128)}', space=vmem, size = 0x12000, scoped, tag = 'internal scratch']
  %s0 = inlined_call_operand.vmem [shape: s32[8,1], index: 0, kind: input, shape index: {}]
  %s1 = inlined_call_operand.vmem [shape: s32[8,1], index: 1, kind: input, shape index: {}]
  %s2 = inlined_call_operand.vmem [shape: s32[8,8], index: 2, kind: input, shape index: {}]
  %s3 = inlined_call_operand.vmem [shape: f32[50,32], index: 3, kind: input, shape index: {}]
  %s4 = inlined_call_operand.vmem [shape: f32[50,32], index: 4, kind: input, shape index: {}]
  %s5 = inlined_call_operand.hbm [shape: f32[1,8,128], index: 5, kind: output, shape index: {}]
  %s6 = sld [smem:[#allocation0]]
  $region30: #{tpu_custom_call.1} parent=0
    _
  %s8 = ssub.s32 1, %s6
  %s9 = scalar_select 0, %s8, %s6
  $region1: #{tpu_custom_call.1} parent=0
    #allocation2 [shape = 'u8[4096]{0}', space=vmem, size = 0x1000, scoped, tag = 'output window, operand 0, single buffered']
    #allocation3 [shape = 's32[1]{0}', space=sflag, size = 0x4, scoped, tag = 'scoped memory for tpu_custom_call.1']
    %10 = vsyncpa [#allocation3], 0
    // Predicated region
    $region2: #{tpu_custom_call.1} parent=1 // pred_check
      _
    $region3: #{tpu_custom_call.1} parent=1 // pred_check_branch
      %12 = sbr.rel (0) target = $region5
    $region4: #{tpu_custom_call.1} parent=1 // pred_region
      _
    $region5: #{tpu_custom_call.1} parent=1 // pred_fallthru
      _
    // Predicated region
    $region6: #{tpu_custom_call.1} parent=1 // pred_check
      _
    $region7: #{tpu_custom_call.1} parent=1 // pred_check_branch
      %14 = sbr.rel (0) target = $region9
    $region8: #{tpu_custom_call.1} parent=1 // pred_region
      _
    $region9: #{tpu_custom_call.1} parent=1 // pred_fallthru
      _
    // Predicated region
    $region10: #{tpu_custom_call.1} parent=1 // pred_check
      _
    $region11: #{tpu_custom_call.1} parent=1 // pred_check_branch
      %16 = sbr.rel (0) target = $region13
    $region12: #{tpu_custom_call.1} parent=1 // pred_region
      _
    $region13: #{tpu_custom_call.1} parent=1 // pred_fallthru
      _
    // Predicated region
    $region14: #{tpu_custom_call.1} parent=1 // pred_check
      _
    $region15: #{tpu_custom_call.1} parent=1 // pred_check_branch
      %18 = sbr.rel (0) target = $region17
    $region16: #{tpu_custom_call.1} parent=1 // pred_region
      _
    $region17: #{tpu_custom_call.1} parent=1 // pred_fallthru
      _
    // Predicated region
    $region18: #{tpu_custom_call.1} parent=1 // pred_check
      _
    $region19: #{tpu_custom_call.1} parent=1 // pred_check_branch
      %20 = sbr.rel (0) target = $region21
    $region20: #{tpu_custom_call.1} parent=1 // pred_region
      _
    $region21: #{tpu_custom_call.1} parent=1 // pred_fallthru
      _
    %v21 = vlaneseq
    %v22 = vand.u32 %v21, 127
    %v23 = vld [vmem:[%s0] sm:$0xff]
    %24 = vset.pattern.permute.xlu0 0
    %25 = vperm.xlu0 %24, %v23
    %v26 = vpop.permute.xlu0 %25
    %vm27 = vcmp.eq.s32.totalorder %v22, %v26
    %v28 = vsel %vm27, 1, 0
    %v29 = vcvt.s32.f32 %v28
    %v30 = vld [vmem:[%s1] sm:$0xff]
    %31 = vset.pattern.permute.xlu0 0
    %32 = vperm.xlu0 %31, %v30
    %v33 = vpop.permute.xlu0 %32
    %vm34 = vcmp.eq.s32.totalorder %v22, %v33
    %v35 = vsel %vm34, 1, 0
    %v36 = vcvt.s32.f32 %v35
    %v37 = vld [vmem:[%s2] sm:$0xff]
    %38 = vset.pattern.permute.xlu0 0
    %39 = vperm.xlu0 %38, %v37
    %v40 = vpop.permute.xlu0 %39
    %vm41 = vcmp.eq.s32.totalorder %v22, %v40
    %v42 = vsel %vm41, 1, 0
    %v43 = vcvt.s32.f32 %v42
    %44 = vset.pattern.permute.xlu0 1
    %45 = vperm.xlu0 %44, %v37
    %v46 = vpop.permute.xlu0 %45
    %vm47 = vcmp.eq.s32.totalorder %v22, %v46
    %v48 = vsel %vm47, 1, 0
    %v49 = vcvt.s32.f32 %v48
    %v50 = vadd.f32 %v43, %v49
    %51 = vset.pattern.permute.xlu0 2
    %52 = vperm.xlu0 %51, %v37
    %v53 = vpop.permute.xlu0 %52
    %vm54 = vcmp.eq.s32.totalorder %v22, %v53
    %v55 = vsel %vm54, 1, 0
    %v56 = vcvt.s32.f32 %v55
    %v57 = vadd.f32 %v50, %v56
    %58 = vset.pattern.permute.xlu0 3
    %59 = vperm.xlu0 %58, %v37
    %v60 = vpop.permute.xlu0 %59
    %vm61 = vcmp.eq.s32.totalorder %v22, %v60
    %v62 = vsel %vm61, 1, 0
    %v63 = vcvt.s32.f32 %v62
    %v64 = vadd.f32 %v57, %v63
    %65 = vset.pattern.permute.xlu0 4
    %66 = vperm.xlu0 %65, %v37
    %v67 = vpop.permute.xlu0 %66
    %vm68 = vcmp.eq.s32.totalorder %v22, %v67
    %v69 = vsel %vm68, 1, 0
    %v70 = vcvt.s32.f32 %v69
    %v71 = vadd.f32 %v64, %v70
    %72 = vset.pattern.permute.xlu0 5
    %73 = vperm.xlu0 %72, %v37
    %v74 = vpop.permute.xlu0 %73
    %vm75 = vcmp.eq.s32.totalorder %v22, %v74
    %v76 = vsel %vm75, 1, 0
    %v77 = vcvt.s32.f32 %v76
    %v78 = vadd.f32 %v71, %v77
    %79 = vset.pattern.permute.xlu0 6
    %80 = vperm.xlu0 %79, %v37
    %v81 = vpop.permute.xlu0 %80
    %vm82 = vcmp.eq.s32.totalorder %v22, %v81
    %v83 = vsel %vm82, 1, 0
    %v84 = vcvt.s32.f32 %v83
    %v85 = vadd.f32 %v78, %v84
    %86 = vset.pattern.permute.xlu0 7
    %87 = vperm.xlu0 %86, %v37
    %v88 = vpop.permute.xlu0 %87
    %vm89 = vcmp.eq.s32.totalorder %v22, %v88
    %v90 = vsel %vm89, 1, 0
    %v91 = vcvt.s32.f32 %v90
    %v92 = vadd.f32 %v85, %v91
    %v93 = vld [vmem:[%s3] sm:$0xff]
    %v94 = vld [vmem:[%s3 + $0x8] sm:$0xff]
    %v95 = vld [vmem:[%s3 + $0x10] sm:$0xff]
    %v96 = vld [vmem:[%s3 + $0x18] sm:$0xff]
    %v97 = vld [vmem:[%s3 + $0x20] sm:$0xff]
    %v98 = vld [vmem:[%s3 + $0x28] sm:$0xff]
    %v99 = vld [vmem:[%s3 + $0x30] sm:$0x3]
    %v100 = vld [vmem:[%s4] sm:$0xff]
    %v101 = vld [vmem:[%s4 + $0x8] sm:$0xff]
    %v102 = vld [vmem:[%s4 + $0x10] sm:$0xff]
    %v103 = vld [vmem:[%s4 + $0x18] sm:$0xff]
    %v104 = vld [vmem:[%s4 + $0x20] sm:$0xff]
    %v105 = vld [vmem:[%s4 + $0x28] sm:$0xff]
    %v106 = vld [vmem:[%s4 + $0x30] sm:$0x3]
    %vm107 = vcmask 408576
    %v109 = vsel %vm107, %v29, 0
    %vm111 = vcmask 1041408
    %v113 = vsel %vm111, %v99, 0
    %115 = vmatprep.subr.mxu0 0.0
    %116 = vmatpush1.msra.mxu0 0.0
    %117 = vmatprep.subr.mxu0 0.0
    %118 = vmatpush1.msra.mxu0 0.0
    %119 = vmatprep.subr.mxu0 0.0
    %120 = vmatpush1.msra.mxu0 0.0
    %121 = vmatprep.subr.mxu0 0.0
    %122 = vmatpush1.msra.mxu0 0.0
    %123 = vmatprep.subr.mxu0 0.0
    %124 = vmatpush1.msra.mxu0 0.0
    %125 = vmatprep.subr.mxu0 0.0
    %126 = vmatpush1.msra.mxu0 0.0
    %127 = vmatprep.subr.mxu0 0.0
    %128 = vmatpush1.msra.mxu0 0.0
    %129 = vmatprep.subr.mxu0 0.0
    %130 = vmatpush1.msra.mxu0 0.0
    %131 = vmatprep.subr.mxu0 0.0
    %132 = vmatpush1.msra.mxu0 0.0
    %133 = vmatprep.subr.mxu0 0.0
    %v134 = vand.u32 %v113, 4294901760
    %135 = vmatpush1.msra.mxu0 %v134
    %136 = vmatprep.subr.mxu0 0.0
    %v137 = vand.u32 %v98, 4294901760
    %138 = vmatpush1.msra.mxu0 %v137
    %139 = vmatprep.subr.mxu0 0.0
    %v140 = vand.u32 %v97, 4294901760
    %141 = vmatpush1.msra.mxu0 %v140
    %142 = vmatprep.subr.mxu0 0.0
    %v143 = vand.u32 %v96, 4294901760
    %144 = vmatpush1.msra.mxu0 %v143
    %145 = vmatprep.subr.mxu0 0.0
    %v146 = vand.u32 %v95, 4294901760
    %147 = vmatpush1.msra.mxu0 %v146
    %148 = vmatprep.subr.mxu0 0.0
    %v149 = vand.u32 %v94, 4294901760
    %150 = vmatpush1.msra.mxu0 %v149
    %151 = vmatprep.subr.mxu0 0.0
    %v152 = vand.u32 %v93, 4294901760
    %153 = vmatpush1.msra.mxu0 %v152
    %154 = vmatprep.subr.mxu0 0.0
    %155 = vmatpush2.msra.mxu0 0.0
    %156 = vmatprep.subr.mxu0 0.0
    %157 = vmatpush2.msra.mxu0 0.0
    %158 = vmatprep.subr.mxu0 0.0
    %159 = vmatpush2.msra.mxu0 0.0
    %160 = vmatprep.subr.mxu0 0.0
    %161 = vmatpush2.msra.mxu0 0.0
    %162 = vmatprep.subr.mxu0 0.0
    %163 = vmatpush2.msra.mxu0 0.0
    %164 = vmatprep.subr.mxu0 0.0
    %165 = vmatpush2.msra.mxu0 0.0
    %166 = vmatprep.subr.mxu0 0.0
    %167 = vmatpush2.msra.mxu0 0.0
    %168 = vmatprep.subr.mxu0 0.0
    %169 = vmatpush2.msra.mxu0 0.0
    %170 = vmatprep.subr.mxu0 0.0
    %171 = vmatpush2.msra.mxu0 0.0
    %172 = vmatprep.subr.mxu0 0.0
    %173 = vmatpush2.msra.mxu0 0.0
    %174 = vmatprep.subr.mxu0 0.0
    %175 = vmatpush2.msra.mxu0 0.0
    %176 = vmatprep.subr.mxu0 0.0
    %177 = vmatpush2.msra.mxu0 0.0
    %178 = vmatprep.subr.mxu0 0.0
    %179 = vmatpush2.msra.mxu0 0.0
    %180 = vmatprep.subr.mxu0 0.0
    %181 = vmatpush2.msra.mxu0 0.0
    %182 = vmatprep.subr.mxu0 0.0
    %183 = vmatpush2.msra.mxu0 0.0
    %184 = vmatprep.subr.mxu0 0.0
    %185 = vmatpush2.msra.mxu0 0.0
    %186 = vmatprep.mubr.f32.mxu0 0.0
    %v187 = vand.u32 %v109, 4294901760
    %v188 = vsub.f32 %v109, %v187
    %v189 = vand.u32 %v188, 4294901760
    %v190 = vsub.f32 %v188, %v189
    %v191 = vand.u32 %v190, 4294901760
    %192 = vmatmul.mubr.f32.gmra.mxu0 %v191
    %v193 = vpop.f32.mrf.mxu0
    %v194 = vadd.f32 0.0, %v193
    %v195 = vpop.f32.mrf.mxu0
    %196 = vdwg.mxu0
    %197 = vmatprep.subr.mxu0 0.0
    %198 = vmatpush1.msra.mxu0 0.0
    %199 = vmatprep.subr.mxu0 0.0
    %200 = vmatpush1.msra.mxu0 0.0
    %201 = vmatprep.subr.mxu0 0.0
    %202 = vmatpush1.msra.mxu0 0.0
    %203 = vmatprep.subr.mxu0 0.0
    %204 = vmatpush1.msra.mxu0 0.0
    %205 = vmatprep.subr.mxu0 0.0
    %206 = vmatpush1.msra.mxu0 0.0
    %207 = vmatprep.subr.mxu0 0.0
    %208 = vmatpush1.msra.mxu0 0.0
    %209 = vmatprep.subr.mxu0 0.0
    %210 = vmatpush1.msra.mxu0 0.0
    %211 = vmatprep.subr.mxu0 0.0
    %212 = vmatpush1.msra.mxu0 0.0
    %213 = vmatprep.subr.mxu0 0.0
    %214 = vmatpush1.msra.mxu0 0.0
    %215 = vmatprep.subr.mxu0 0.0
    %v216 = vand.u32 %v113, 4294901760
    %v217 = vsub.f32 %v113, %v216
    %v218 = vand.u32 %v217, 4294901760
    %v219 = vsub.f32 %v217, %v218
    %v220 = vand.u32 %v219, 4294901760
    %221 = vmatpush1.msra.mxu0 %v220
    %222 = vmatprep.subr.mxu0 0.0
    %v223 = vand.u32 %v98, 4294901760
    %v224 = vsub.f32 %v98, %v223
    %v225 = vand.u32 %v224, 4294901760
    %v226 = vsub.f32 %v224, %v225
    %v227 = vand.u32 %v226, 4294901760
    %228 = vmatpush1.msra.mxu0 %v227
    %229 = vmatprep.subr.mxu0 0.0
    %v230 = vand.u32 %v97, 4294901760
    %v231 = vsub.f32 %v97, %v230
    %v232 = vand.u32 %v231, 4294901760
    %v233 = vsub.f32 %v231, %v232
    %v234 = vand.u32 %v233, 4294901760
    %235 = vmatpush1.msra.mxu0 %v234
    %236 = vmatprep.subr.mxu0 0.0
    %v237 = vand.u32 %v96, 4294901760
    %v238 = vsub.f32 %v96, %v237
    %v239 = vand.u32 %v238, 4294901760
    %v240 = vsub.f32 %v238, %v239
    %v241 = vand.u32 %v240, 4294901760
    %242 = vmatpush1.msra.mxu0 %v241
    %243 = vmatprep.subr.mxu0 0.0
    %v244 = vand.u32 %v95, 4294901760
    %v245 = vsub.f32 %v95, %v244
    %v246 = vand.u32 %v245, 4294901760
    %v247 = vsub.f32 %v245, %v246
    %v248 = vand.u32 %v247, 4294901760
    %249 = vmatpush1.msra.mxu0 %v248
    %250 = vmatprep.subr.mxu0 0.0
    %v251 = vand.u32 %v94, 4294901760
    %v252 = vsub.f32 %v94, %v251
    %v253 = vand.u32 %v252, 4294901760
    %v254 = vsub.f32 %v252, %v253
    %v255 = vand.u32 %v254, 4294901760
    %256 = vmatpush1.msra.mxu0 %v255
    %257 = vmatprep.subr.mxu0 0.0
    %v258 = vand.u32 %v93, 4294901760
    %v259 = vsub.f32 %v93, %v258
    %v260 = vand.u32 %v259, 4294901760
    %v261 = vsub.f32 %v259, %v260
    %v262 = vand.u32 %v261, 4294901760
    %263 = vmatpush1.msra.mxu0 %v262
    %264 = vmatprep.subr.mxu0 0.0
    %265 = vmatpush2.msra.mxu0 0.0
    %266 = vmatprep.subr.mxu0 0.0
    %267 = vmatpush2.msra.mxu0 0.0
    %268 = vmatprep.subr.mxu0 0.0
    %269 = vmatpush2.msra.mxu0 0.0
    %270 = vmatprep.subr.mxu0 0.0
    %271 = vmatpush2.msra.mxu0 0.0
    %272 = vmatprep.subr.mxu0 0.0
    %273 = vmatpush2.msra.mxu0 0.0
    %274 = vmatprep.subr.mxu0 0.0
    %275 = vmatpush2.msra.mxu0 0.0
    %276 = vmatprep.subr.mxu0 0.0
    %277 = vmatpush2.msra.mxu0 0.0
    %278 = vmatprep.subr.mxu0 0.0
    %279 = vmatpush2.msra.mxu0 0.0
    %280 = vmatprep.subr.mxu0 0.0
    %281 = vmatpush2.msra.mxu0 0.0
    %282 = vmatprep.subr.mxu0 0.0
    %283 = vmatpush2.msra.mxu0 0.0
    %284 = vmatprep.subr.mxu0 0.0
    %285 = vmatpush2.msra.mxu0 0.0
    %286 = vmatprep.subr.mxu0 0.0
    %287 = vmatpush2.msra.mxu0 0.0
    %288 = vmatprep.subr.mxu0 0.0
    %289 = vmatpush2.msra.mxu0 0.0
    %290 = vmatprep.subr.mxu0 0.0
    %291 = vmatpush2.msra.mxu0 0.0
    %292 = vmatprep.subr.mxu0 0.0
    %293 = vmatpush2.msra.mxu0 0.0
    %294 = vmatprep.subr.mxu0 0.0
    %295 = vmatpush2.msra.mxu0 0.0
    %296 = vmatprep.mubr.f32.mxu0 0.0
    %v297 = vand.u32 %v109, 4294901760
    %298 = vmatmul.mubr.f32.gmra.mxu0 %v297
    %v299 = vpop.f32.mrf.mxu0
    %v300 = vadd.f32 %v194, %v299
    %v301 = vpop.f32.mrf.mxu0
    %302 = vdwg.mxu0
    %303 = vmatprep.subr.mxu0 0.0
    %304 = vmatpush1.msra.mxu0 0.0
    %305 = vmatprep.subr.mxu0 0.0
    %306 = vmatpush1.msra.mxu0 0.0
    %307 = vmatprep.subr.mxu0 0.0
    %308 = vmatpush1.msra.mxu0 0.0
    %309 = vmatprep.subr.mxu0 0.0
    %310 = vmatpush1.msra.mxu0 0.0
    %311 = vmatprep.subr.mxu0 0.0
    %312 = vmatpush1.msra.mxu0 0.0
    %313 = vmatprep.subr.mxu0 0.0
    %314 = vmatpush1.msra.mxu0 0.0
    %315 = vmatprep.subr.mxu0 0.0
    %316 = vmatpush1.msra.mxu0 0.0
    %317 = vmatprep.subr.mxu0 0.0
    %318 = vmatpush1.msra.mxu0 0.0
    %319 = vmatprep.subr.mxu0 0.0
    %320 = vmatpush1.msra.mxu0 0.0
    %321 = vmatprep.subr.mxu0 0.0
    %v322 = vand.u32 %v113, 4294901760
    %v323 = vsub.f32 %v113, %v322
    %324 = vmatpush1.msra.mxu0 %v323
    %325 = vmatprep.subr.mxu0 0.0
    %v326 = vand.u32 %v98, 4294901760
    %v327 = vsub.f32 %v98, %v326
    %328 = vmatpush1.msra.mxu0 %v327
    %329 = vmatprep.subr.mxu0 0.0
    %v330 = vand.u32 %v97, 4294901760
    %v331 = vsub.f32 %v97, %v330
    %332 = vmatpush1.msra.mxu0 %v331
    %333 = vmatprep.subr.mxu0 0.0
    %v334 = vand.u32 %v96, 4294901760
    %v335 = vsub.f32 %v96, %v334
    %336 = vmatpush1.msra.mxu0 %v335
    %337 = vmatprep.subr.mxu0 0.0
    %v338 = vand.u32 %v95, 4294901760
    %v339 = vsub.f32 %v95, %v338
    %340 = vmatpush1.msra.mxu0 %v339
    %341 = vmatprep.subr.mxu0 0.0
    %v342 = vand.u32 %v94, 4294901760
    %v343 = vsub.f32 %v94, %v342
    %344 = vmatpush1.msra.mxu0 %v343
    %345 = vmatprep.subr.mxu0 0.0
    %v346 = vand.u32 %v93, 4294901760
    %v347 = vsub.f32 %v93, %v346
    %348 = vmatpush1.msra.mxu0 %v347
    %349 = vmatprep.subr.mxu0 0.0
    %350 = vmatpush2.msra.mxu0 0.0
    %351 = vmatprep.subr.mxu0 0.0
    %352 = vmatpush2.msra.mxu0 0.0
    %353 = vmatprep.subr.mxu0 0.0
    %354 = vmatpush2.msra.mxu0 0.0
    %355 = vmatprep.subr.mxu0 0.0
    %356 = vmatpush2.msra.mxu0 0.0
    %357 = vmatprep.subr.mxu0 0.0
    %358 = vmatpush2.msra.mxu0 0.0
    %359 = vmatprep.subr.mxu0 0.0
    %360 = vmatpush2.msra.mxu0 0.0
    %361 = vmatprep.subr.mxu0 0.0
    %362 = vmatpush2.msra.mxu0 0.0
    %363 = vmatprep.subr.mxu0 0.0
    %364 = vmatpush2.msra.mxu0 0.0
    %365 = vmatprep.subr.mxu0 0.0
    %366 = vmatpush2.msra.mxu0 0.0
    %367 = vmatprep.subr.mxu0 0.0
    %368 = vmatpush2.msra.mxu0 0.0
    %369 = vmatprep.subr.mxu0 0.0
    %370 = vmatpush2.msra.mxu0 0.0
    %371 = vmatprep.subr.mxu0 0.0
    %372 = vmatpush2.msra.mxu0 0.0
    %373 = vmatprep.subr.mxu0 0.0
    %374 = vmatpush2.msra.mxu0 0.0
    %375 = vmatprep.subr.mxu0 0.0
    %376 = vmatpush2.msra.mxu0 0.0
    %377 = vmatprep.subr.mxu0 0.0
    %378 = vmatpush2.msra.mxu0 0.0
    %379 = vmatprep.subr.mxu0 0.0
    %380 = vmatpush2.msra.mxu0 0.0
    %381 = vmatprep.mubr.f32.mxu0 0.0
    %v382 = vand.u32 %v109, 4294901760
    %v383 = vsub.f32 %v109, %v382
    %384 = vmatmul.mubr.f32.gmra.mxu0 %v383
    %v385 = vpop.f32.mrf.mxu0
    %v386 = vadd.f32 %v300, %v385
    %v387 = vpop.f32.mrf.mxu0
    %388 = vdwg.mxu0
    %389 = vmatprep.subr.mxu0 0.0
    %390 = vmatpush1.msra.mxu0 0.0
    %391 = vmatprep.subr.mxu0 0.0
    %392 = vmatpush1.msra.mxu0 0.0
    %393 = vmatprep.subr.mxu0 0.0
    %394 = vmatpush1.msra.mxu0 0.0
    %395 = vmatprep.subr.mxu0 0.0
    %396 = vmatpush1.msra.mxu0 0.0
    %397 = vmatprep.subr.mxu0 0.0
    %398 = vmatpush1.msra.mxu0 0.0
    %399 = vmatprep.subr.mxu0 0.0
    %400 = vmatpush1.msra.mxu0 0.0
    %401 = vmatprep.subr.mxu0 0.0
    %402 = vmatpush1.msra.mxu0 0.0
    %403 = vmatprep.subr.mxu0 0.0
    %404 = vmatpush1.msra.mxu0 0.0
    %405 = vmatprep.subr.mxu0 0.0
    %406 = vmatpush1.msra.mxu0 0.0
    %407 = vmatprep.subr.mxu0 0.0
    %v408 = vand.u32 %v113, 4294901760
    %409 = vmatpush1.msra.mxu0 %v408
    %410 = vmatprep.subr.mxu0 0.0
    %v411 = vand.u32 %v98, 4294901760
    %412 = vmatpush1.msra.mxu0 %v411
    %413 = vmatprep.subr.mxu0 0.0
    %v414 = vand.u32 %v97, 4294901760
    %415 = vmatpush1.msra.mxu0 %v414
    %416 = vmatprep.subr.mxu0 0.0
    %v417 = vand.u32 %v96, 4294901760
    %418 = vmatpush1.msra.mxu0 %v417
    %419 = vmatprep.subr.mxu0 0.0
    %v420 = vand.u32 %v95, 4294901760
    %421 = vmatpush1.msra.mxu0 %v420
    %422 = vmatprep.subr.mxu0 0.0
    %v423 = vand.u32 %v94, 4294901760
    %424 = vmatpush1.msra.mxu0 %v423
    %425 = vmatprep.subr.mxu0 0.0
    %v426 = vand.u32 %v93, 4294901760
    %427 = vmatpush1.msra.mxu0 %v426
    %428 = vmatprep.subr.mxu0 0.0
    %429 = vmatpush2.msra.mxu0 0.0
    %430 = vmatprep.subr.mxu0 0.0
    %431 = vmatpush2.msra.mxu0 0.0
    %432 = vmatprep.subr.mxu0 0.0
    %433 = vmatpush2.msra.mxu0 0.0
    %434 = vmatprep.subr.mxu0 0.0
    %435 = vmatpush2.msra.mxu0 0.0
    %436 = vmatprep.subr.mxu0 0.0
    %437 = vmatpush2.msra.mxu0 0.0
    %438 = vmatprep.subr.mxu0 0.0
    %439 = vmatpush2.msra.mxu0 0.0
    %440 = vmatprep.subr.mxu0 0.0
    %441 = vmatpush2.msra.mxu0 0.0
    %442 = vmatprep.subr.mxu0 0.0
    %443 = vmatpush2.msra.mxu0 0.0
    %444 = vmatprep.subr.mxu0 0.0
    %445 = vmatpush2.msra.mxu0 0.0
    %446 = vmatprep.subr.mxu0 0.0
    %447 = vmatpush2.msra.mxu0 0.0
    %448 = vmatprep.subr.mxu0 0.0
    %449 = vmatpush2.msra.mxu0 0.0
    %450 = vmatprep.subr.mxu0 0.0
    %451 = vmatpush2.msra.mxu0 0.0
    %452 = vmatprep.subr.mxu0 0.0
    %453 = vmatpush2.msra.mxu0 0.0
    %454 = vmatprep.subr.mxu0 0.0
    %455 = vmatpush2.msra.mxu0 0.0
    %456 = vmatprep.subr.mxu0 0.0
    %457 = vmatpush2.msra.mxu0 0.0
    %458 = vmatprep.subr.mxu0 0.0
    %459 = vmatpush2.msra.mxu0 0.0
    %460 = vmatprep.mubr.f32.mxu0 0.0
    %v461 = vand.u32 %v109, 4294901760
    %v462 = vsub.f32 %v109, %v461
    %v463 = vand.u32 %v462, 4294901760
    %464 = vmatmul.mubr.f32.gmra.mxu0 %v463
    %v465 = vpop.f32.mrf.mxu0
    %v466 = vadd.f32 %v386, %v465
    %v467 = vpop.f32.mrf.mxu0
    %468 = vdwg.mxu0
    %469 = vmatprep.subr.mxu0 0.0
    %470 = vmatpush1.msra.mxu0 0.0
    %471 = vmatprep.subr.mxu0 0.0
    %472 = vmatpush1.msra.mxu0 0.0
    %473 = vmatprep.subr.mxu0 0.0
    %474 = vmatpush1.msra.mxu0 0.0
    %475 = vmatprep.subr.mxu0 0.0
    %476 = vmatpush1.msra.mxu0 0.0
    %477 = vmatprep.subr.mxu0 0.0
    %478 = vmatpush1.msra.mxu0 0.0
    %479 = vmatprep.subr.mxu0 0.0
    %480 = vmatpush1.msra.mxu0 0.0
    %481 = vmatprep.subr.mxu0 0.0
    %482 = vmatpush1.msra.mxu0 0.0
    %483 = vmatprep.subr.mxu0 0.0
    %484 = vmatpush1.msra.mxu0 0.0
    %485 = vmatprep.subr.mxu0 0.0
    %486 = vmatpush1.msra.mxu0 0.0
    %487 = vmatprep.subr.mxu0 0.0
    %v488 = vand.u32 %v113, 4294901760
    %v489 = vsub.f32 %v113, %v488
    %v490 = vand.u32 %v489, 4294901760
    %491 = vmatpush1.msra.mxu0 %v490
    %492 = vmatprep.subr.mxu0 0.0
    %v493 = vand.u32 %v98, 4294901760
    %v494 = vsub.f32 %v98, %v493
    %v495 = vand.u32 %v494, 4294901760
    %496 = vmatpush1.msra.mxu0 %v495
    %497 = vmatprep.subr.mxu0 0.0
    %v498 = vand.u32 %v97, 4294901760
    %v499 = vsub.f32 %v97, %v498
    %v500 = vand.u32 %v499, 4294901760
    %501 = vmatpush1.msra.mxu0 %v500
    %502 = vmatprep.subr.mxu0 0.0
    %v503 = vand.u32 %v96, 4294901760
    %v504 = vsub.f32 %v96, %v503
    %v505 = vand.u32 %v504, 4294901760
    %506 = vmatpush1.msra.mxu0 %v505
    %507 = vmatprep.subr.mxu0 0.0
    %v508 = vand.u32 %v95, 4294901760
    %v509 = vsub.f32 %v95, %v508
    %v510 = vand.u32 %v509, 4294901760
    %511 = vmatpush1.msra.mxu0 %v510
    %512 = vmatprep.subr.mxu0 0.0
    %v513 = vand.u32 %v94, 4294901760
    %v514 = vsub.f32 %v94, %v513
    %v515 = vand.u32 %v514, 4294901760
    %516 = vmatpush1.msra.mxu0 %v515
    %517 = vmatprep.subr.mxu0 0.0
    %v518 = vand.u32 %v93, 4294901760
    %v519 = vsub.f32 %v93, %v518
    %v520 = vand.u32 %v519, 4294901760
    %521 = vmatpush1.msra.mxu0 %v520
    %522 = vmatprep.subr.mxu0 0.0
    %523 = vmatpush2.msra.mxu0 0.0
    %524 = vmatprep.subr.mxu0 0.0
    %525 = vmatpush2.msra.mxu0 0.0
    %526 = vmatprep.subr.mxu0 0.0
    %527 = vmatpush2.msra.mxu0 0.0
    %528 = vmatprep.subr.mxu0 0.0
    %529 = vmatpush2.msra.mxu0 0.0
    %530 = vmatprep.subr.mxu0 0.0
    %531 = vmatpush2.msra.mxu0 0.0
    %532 = vmatprep.subr.mxu0 0.0
    %533 = vmatpush2.msra.mxu0 0.0
    %534 = vmatprep.subr.mxu0 0.0
    %535 = vmatpush2.msra.mxu0 0.0
    %536 = vmatprep.subr.mxu0 0.0
    %537 = vmatpush2.msra.mxu0 0.0
    %538 = vmatprep.subr.mxu0 0.0
    %539 = vmatpush2.msra.mxu0 0.0
    %540 = vmatprep.subr.mxu0 0.0
    %541 = vmatpush2.msra.mxu0 0.0
    %542 = vmatprep.subr.mxu0 0.0
    %543 = vmatpush2.msra.mxu0 0.0
    %544 = vmatprep.subr.mxu0 0.0
    %545 = vmatpush2.msra.mxu0 0.0
    %546 = vmatprep.subr.mxu0 0.0
    %547 = vmatpush2.msra.mxu0 0.0
    %548 = vmatprep.subr.mxu0 0.0
    %549 = vmatpush2.msra.mxu0 0.0
    %550 = vmatprep.subr.mxu0 0.0
    %551 = vmatpush2.msra.mxu0 0.0
    %552 = vmatprep.subr.mxu0 0.0
    %553 = vmatpush2.msra.mxu0 0.0
    %554 = vmatprep.mubr.f32.mxu0 0.0
    %v555 = vand.u32 %v109, 4294901760
    %556 = vmatmul.mubr.f32.gmra.mxu0 %v555
    %v557 = vpop.f32.mrf.mxu0
    %v558 = vadd.f32 %v466, %v557
    %v559 = vpop.f32.mrf.mxu0
    %560 = vdwg.mxu0
    %561 = vmatprep.subr.mxu0 0.0
    %562 = vmatpush1.msra.mxu0 0.0
    %563 = vmatprep.subr.mxu0 0.0
    %564 = vmatpush1.msra.mxu0 0.0
    %565 = vmatprep.subr.mxu0 0.0
    %566 = vmatpush1.msra.mxu0 0.0
    %567 = vmatprep.subr.mxu0 0.0
    %568 = vmatpush1.msra.mxu0 0.0
    %569 = vmatprep.subr.mxu0 0.0
    %570 = vmatpush1.msra.mxu0 0.0
    %571 = vmatprep.subr.mxu0 0.0
    %572 = vmatpush1.msra.mxu0 0.0
    %573 = vmatprep.subr.mxu0 0.0
    %574 = vmatpush1.msra.mxu0 0.0
    %575 = vmatprep.subr.mxu0 0.0
    %576 = vmatpush1.msra.mxu0 0.0
    %577 = vmatprep.subr.mxu0 0.0
    %578 = vmatpush1.msra.mxu0 0.0
    %579 = vmatprep.subr.mxu0 0.0
    %v580 = vand.u32 %v113, 4294901760
    %581 = vmatpush1.msra.mxu0 %v580
    %582 = vmatprep.subr.mxu0 0.0
    %v583 = vand.u32 %v98, 4294901760
    %584 = vmatpush1.msra.mxu0 %v583
    %585 = vmatprep.subr.mxu0 0.0
    %v586 = vand.u32 %v97, 4294901760
    %587 = vmatpush1.msra.mxu0 %v586
    %588 = vmatprep.subr.mxu0 0.0
    %v589 = vand.u32 %v96, 4294901760
    %590 = vmatpush1.msra.mxu0 %v589
    %591 = vmatprep.subr.mxu0 0.0
    %v592 = vand.u32 %v95, 4294901760
    %593 = vmatpush1.msra.mxu0 %v592
    %594 = vmatprep.subr.mxu0 0.0
    %v595 = vand.u32 %v94, 4294901760
    %596 = vmatpush1.msra.mxu0 %v595
    %597 = vmatprep.subr.mxu0 0.0
    %v598 = vand.u32 %v93, 4294901760
    %599 = vmatpush1.msra.mxu0 %v598
    %600 = vmatprep.subr.mxu0 0.0
    %601 = vmatpush2.msra.mxu0 0.0
    %602 = vmatprep.subr.mxu0 0.0
    %603 = vmatpush2.msra.mxu0 0.0
    %604 = vmatprep.subr.mxu0 0.0
    %605 = vmatpush2.msra.mxu0 0.0
    %606 = vmatprep.subr.mxu0 0.0
    %607 = vmatpush2.msra.mxu0 0.0
    %608 = vmatprep.subr.mxu0 0.0
    %609 = vmatpush2.msra.mxu0 0.0
    %610 = vmatprep.subr.mxu0 0.0
    %611 = vmatpush2.msra.mxu0 0.0
    %612 = vmatprep.subr.mxu0 0.0
    %613 = vmatpush2.msra.mxu0 0.0
    %614 = vmatprep.subr.mxu0 0.0
    %615 = vmatpush2.msra.mxu0 0.0
    %616 = vmatprep.subr.mxu0 0.0
    %617 = vmatpush2.msra.mxu0 0.0
    %618 = vmatprep.subr.mxu0 0.0
    %619 = vmatpush2.msra.mxu0 0.0
    %620 = vmatprep.subr.mxu0 0.0
    %621 = vmatpush2.msra.mxu0 0.0
    %622 = vmatprep.subr.mxu0 0.0
    %623 = vmatpush2.msra.mxu0 0.0
    %624 = vmatprep.subr.mxu0 0.0
    %625 = vmatpush2.msra.mxu0 0.0
    %626 = vmatprep.subr.mxu0 0.0
    %627 = vmatpush2.msra.mxu0 0.0
    %628 = vmatprep.subr.mxu0 0.0
    %629 = vmatpush2.msra.mxu0 0.0
    %630 = vmatprep.subr.mxu0 0.0
    %631 = vmatpush2.msra.mxu0 0.0
    %632 = vmatprep.mubr.f32.mxu0 0.0
    %v633 = vand.u32 %v109, 4294901760
    %634 = vmatmul.mubr.f32.gmra.mxu0 %v633
    %v635 = vpop.f32.mrf.mxu0
    %v636 = vadd.f32 %v558, %v635
    %v637 = vpop.f32.mrf.mxu0
    %638 = vdwg.mxu0
    %v640 = vsel %vm107, %v36, 0
    %v643 = vsel %vm111, %v106, 0
    %645 = vmatprep.subr.mxu0 0.0
    %646 = vmatpush1.msra.mxu0 0.0
    %647 = vmatprep.subr.mxu0 0.0
    %648 = vmatpush1.msra.mxu0 0.0
    %649 = vmatprep.subr.mxu0 0.0
    %650 = vmatpush1.msra.mxu0 0.0
    %651 = vmatprep.subr.mxu0 0.0
    %652 = vmatpush1.msra.mxu0 0.0
    %653 = vmatprep.subr.mxu0 0.0
    %654 = vmatpush1.msra.mxu0 0.0
    %655 = vmatprep.subr.mxu0 0.0
    %656 = vmatpush1.msra.mxu0 0.0
    %657 = vmatprep.subr.mxu0 0.0
    %658 = vmatpush1.msra.mxu0 0.0
    %659 = vmatprep.subr.mxu0 0.0
    %660 = vmatpush1.msra.mxu0 0.0
    %661 = vmatprep.subr.mxu0 0.0
    %662 = vmatpush1.msra.mxu0 0.0
    %663 = vmatprep.subr.mxu0 0.0
    %v664 = vand.u32 %v643, 4294901760
    %665 = vmatpush1.msra.mxu0 %v664
    %666 = vmatprep.subr.mxu0 0.0
    %v667 = vand.u32 %v105, 4294901760
    %668 = vmatpush1.msra.mxu0 %v667
    %669 = vmatprep.subr.mxu0 0.0
    %v670 = vand.u32 %v104, 4294901760
    %671 = vmatpush1.msra.mxu0 %v670
    %672 = vmatprep.subr.mxu0 0.0
    %v673 = vand.u32 %v103, 4294901760
    %674 = vmatpush1.msra.mxu0 %v673
    %675 = vmatprep.subr.mxu0 0.0
    %v676 = vand.u32 %v102, 4294901760
    %677 = vmatpush1.msra.mxu0 %v676
    %678 = vmatprep.subr.mxu0 0.0
    %v679 = vand.u32 %v101, 4294901760
    %680 = vmatpush1.msra.mxu0 %v679
    %681 = vmatprep.subr.mxu0 0.0
    %v682 = vand.u32 %v100, 4294901760
    %683 = vmatpush1.msra.mxu0 %v682
    %684 = vmatprep.subr.mxu0 0.0
    %685 = vmatpush2.msra.mxu0 0.0
    %686 = vmatprep.subr.mxu0 0.0
    %687 = vmatpush2.msra.mxu0 0.0
    %688 = vmatprep.subr.mxu0 0.0
    %689 = vmatpush2.msra.mxu0 0.0
    %690 = vmatprep.subr.mxu0 0.0
    %691 = vmatpush2.msra.mxu0 0.0
    %692 = vmatprep.subr.mxu0 0.0
    %693 = vmatpush2.msra.mxu0 0.0
    %694 = vmatprep.subr.mxu0 0.0
    %695 = vmatpush2.msra.mxu0 0.0
    %696 = vmatprep.subr.mxu0 0.0
    %697 = vmatpush2.msra.mxu0 0.0
    %698 = vmatprep.subr.mxu0 0.0
    %699 = vmatpush2.msra.mxu0 0.0
    %700 = vmatprep.subr.mxu0 0.0
    %701 = vmatpush2.msra.mxu0 0.0
    %702 = vmatprep.subr.mxu0 0.0
    %703 = vmatpush2.msra.mxu0 0.0
    %704 = vmatprep.subr.mxu0 0.0
    %705 = vmatpush2.msra.mxu0 0.0
    %706 = vmatprep.subr.mxu0 0.0
    %707 = vmatpush2.msra.mxu0 0.0
    %708 = vmatprep.subr.mxu0 0.0
    %709 = vmatpush2.msra.mxu0 0.0
    %710 = vmatprep.subr.mxu0 0.0
    %711 = vmatpush2.msra.mxu0 0.0
    %712 = vmatprep.subr.mxu0 0.0
    %713 = vmatpush2.msra.mxu0 0.0
    %714 = vmatprep.subr.mxu0 0.0
    %715 = vmatpush2.msra.mxu0 0.0
    %716 = vmatprep.mubr.f32.mxu0 0.0
    %v717 = vand.u32 %v640, 4294901760
    %v718 = vsub.f32 %v640, %v717
    %v719 = vand.u32 %v718, 4294901760
    %v720 = vsub.f32 %v718, %v719
    %v721 = vand.u32 %v720, 4294901760
    %722 = vmatmul.mubr.f32.gmra.mxu0 %v721
    %v723 = vpop.f32.mrf.mxu0
    %v724 = vadd.f32 0.0, %v723
    %v725 = vpop.f32.mrf.mxu0
    %726 = vdwg.mxu0
    %727 = vmatprep.subr.mxu0 0.0
    %728 = vmatpush1.msra.mxu0 0.0
    %729 = vmatprep.subr.mxu0 0.0
    %730 = vmatpush1.msra.mxu0 0.0
    %731 = vmatprep.subr.mxu0 0.0
    %732 = vmatpush1.msra.mxu0 0.0
    %733 = vmatprep.subr.mxu0 0.0
    %734 = vmatpush1.msra.mxu0 0.0
    %735 = vmatprep.subr.mxu0 0.0
    %736 = vmatpush1.msra.mxu0 0.0
    %737 = vmatprep.subr.mxu0 0.0
    %738 = vmatpush1.msra.mxu0 0.0
    %739 = vmatprep.subr.mxu0 0.0
    %740 = vmatpush1.msra.mxu0 0.0
    %741 = vmatprep.subr.mxu0 0.0
    %742 = vmatpush1.msra.mxu0 0.0
    %743 = vmatprep.subr.mxu0 0.0
    %744 = vmatpush1.msra.mxu0 0.0
    %745 = vmatprep.subr.mxu0 0.0
    %v746 = vand.u32 %v643, 4294901760
    %v747 = vsub.f32 %v643, %v746
    %v748 = vand.u32 %v747, 4294901760
    %v749 = vsub.f32 %v747, %v748
    %v750 = vand.u32 %v749, 4294901760
    %751 = vmatpush1.msra.mxu0 %v750
    %752 = vmatprep.subr.mxu0 0.0
    %v753 = vand.u32 %v105, 4294901760
    %v754 = vsub.f32 %v105, %v753
    %v755 = vand.u32 %v754, 4294901760
    %v756 = vsub.f32 %v754, %v755
    %v757 = vand.u32 %v756, 4294901760
    %758 = vmatpush1.msra.mxu0 %v757
    %759 = vmatprep.subr.mxu0 0.0
    %v760 = vand.u32 %v104, 4294901760
    %v761 = vsub.f32 %v104, %v760
    %v762 = vand.u32 %v761, 4294901760
    %v763 = vsub.f32 %v761, %v762
    %v764 = vand.u32 %v763, 4294901760
    %765 = vmatpush1.msra.mxu0 %v764
    %766 = vmatprep.subr.mxu0 0.0
    %v767 = vand.u32 %v103, 4294901760
    %v768 = vsub.f32 %v103, %v767
    %v769 = vand.u32 %v768, 4294901760
    %v770 = vsub.f32 %v768, %v769
    %v771 = vand.u32 %v770, 4294901760
    %772 = vmatpush1.msra.mxu0 %v771
    %773 = vmatprep.subr.mxu0 0.0
    %v774 = vand.u32 %v102, 4294901760
    %v775 = vsub.f32 %v102, %v774
    %v776 = vand.u32 %v775, 4294901760
    %v777 = vsub.f32 %v775, %v776
    %v778 = vand.u32 %v777, 4294901760
    %779 = vmatpush1.msra.mxu0 %v778
    %780 = vmatprep.subr.mxu0 0.0
    %v781 = vand.u32 %v101, 4294901760
    %v782 = vsub.f32 %v101, %v781
    %v783 = vand.u32 %v782, 4294901760
    %v784 = vsub.f32 %v782, %v783
    %v785 = vand.u32 %v784, 4294901760
    %786 = vmatpush1.msra.mxu0 %v785
    %787 = vmatprep.subr.mxu0 0.0
    %v788 = vand.u32 %v100, 4294901760
    %v789 = vsub.f32 %v100, %v788
    %v790 = vand.u32 %v789, 4294901760
    %v791 = vsub.f32 %v789, %v790
    %v792 = vand.u32 %v791, 4294901760
    %793 = vmatpush1.msra.mxu0 %v792
    %794 = vmatprep.subr.mxu0 0.0
    %795 = vmatpush2.msra.mxu0 0.0
    %796 = vmatprep.subr.mxu0 0.0
    %797 = vmatpush2.msra.mxu0 0.0
    %798 = vmatprep.subr.mxu0 0.0
    %799 = vmatpush2.msra.mxu0 0.0
    %800 = vmatprep.subr.mxu0 0.0
    %801 = vmatpush2.msra.mxu0 0.0
    %802 = vmatprep.subr.mxu0 0.0
    %803 = vmatpush2.msra.mxu0 0.0
    %804 = vmatprep.subr.mxu0 0.0
    %805 = vmatpush2.msra.mxu0 0.0
    %806 = vmatprep.subr.mxu0 0.0
    %807 = vmatpush2.msra.mxu0 0.0
    %808 = vmatprep.subr.mxu0 0.0
    %809 = vmatpush2.msra.mxu0 0.0
    %810 = vmatprep.subr.mxu0 0.0
    %811 = vmatpush2.msra.mxu0 0.0
    %812 = vmatprep.subr.mxu0 0.0
    %813 = vmatpush2.msra.mxu0 0.0
    %814 = vmatprep.subr.mxu0 0.0
    %815 = vmatpush2.msra.mxu0 0.0
    %816 = vmatprep.subr.mxu0 0.0
    %817 = vmatpush2.msra.mxu0 0.0
    %818 = vmatprep.subr.mxu0 0.0
    %819 = vmatpush2.msra.mxu0 0.0
    %820 = vmatprep.subr.mxu0 0.0
    %821 = vmatpush2.msra.mxu0 0.0
    %822 = vmatprep.subr.mxu0 0.0
    %823 = vmatpush2.msra.mxu0 0.0
    %824 = vmatprep.subr.mxu0 0.0
    %825 = vmatpush2.msra.mxu0 0.0
    %826 = vmatprep.mubr.f32.mxu0 0.0
    %v827 = vand.u32 %v640, 4294901760
    %828 = vmatmul.mubr.f32.gmra.mxu0 %v827
    %v829 = vpop.f32.mrf.mxu0
    %v830 = vadd.f32 %v724, %v829
    %v831 = vpop.f32.mrf.mxu0
    %832 = vdwg.mxu0
    %833 = vmatprep.subr.mxu0 0.0
    %834 = vmatpush1.msra.mxu0 0.0
    %835 = vmatprep.subr.mxu0 0.0
    %836 = vmatpush1.msra.mxu0 0.0
    %837 = vmatprep.subr.mxu0 0.0
    %838 = vmatpush1.msra.mxu0 0.0
    %839 = vmatprep.subr.mxu0 0.0
    %840 = vmatpush1.msra.mxu0 0.0
    %841 = vmatprep.subr.mxu0 0.0
    %842 = vmatpush1.msra.mxu0 0.0
    %843 = vmatprep.subr.mxu0 0.0
    %844 = vmatpush1.msra.mxu0 0.0
    %845 = vmatprep.subr.mxu0 0.0
    %846 = vmatpush1.msra.mxu0 0.0
    %847 = vmatprep.subr.mxu0 0.0
    %848 = vmatpush1.msra.mxu0 0.0
    %849 = vmatprep.subr.mxu0 0.0
    %850 = vmatpush1.msra.mxu0 0.0
    %851 = vmatprep.subr.mxu0 0.0
    %v852 = vand.u32 %v643, 4294901760
    %v853 = vsub.f32 %v643, %v852
    %854 = vmatpush1.msra.mxu0 %v853
    %855 = vmatprep.subr.mxu0 0.0
    %v856 = vand.u32 %v105, 4294901760
    %v857 = vsub.f32 %v105, %v856
    %858 = vmatpush1.msra.mxu0 %v857
    %859 = vmatprep.subr.mxu0 0.0
    %v860 = vand.u32 %v104, 4294901760
    %v861 = vsub.f32 %v104, %v860
    %862 = vmatpush1.msra.mxu0 %v861
    %863 = vmatprep.subr.mxu0 0.0
    %v864 = vand.u32 %v103, 4294901760
    %v865 = vsub.f32 %v103, %v864
    %866 = vmatpush1.msra.mxu0 %v865
    %867 = vmatprep.subr.mxu0 0.0
    %v868 = vand.u32 %v102, 4294901760
    %v869 = vsub.f32 %v102, %v868
    %870 = vmatpush1.msra.mxu0 %v869
    %871 = vmatprep.subr.mxu0 0.0
    %v872 = vand.u32 %v101, 4294901760
    %v873 = vsub.f32 %v101, %v872
    %874 = vmatpush1.msra.mxu0 %v873
    %875 = vmatprep.subr.mxu0 0.0
    %v876 = vand.u32 %v100, 4294901760
    %v877 = vsub.f32 %v100, %v876
    %878 = vmatpush1.msra.mxu0 %v877
    %879 = vmatprep.subr.mxu0 0.0
    %880 = vmatpush2.msra.mxu0 0.0
    %881 = vmatprep.subr.mxu0 0.0
    %882 = vmatpush2.msra.mxu0 0.0
    %883 = vmatprep.subr.mxu0 0.0
    %884 = vmatpush2.msra.mxu0 0.0
    %885 = vmatprep.subr.mxu0 0.0
    %886 = vmatpush2.msra.mxu0 0.0
    %887 = vmatprep.subr.mxu0 0.0
    %888 = vmatpush2.msra.mxu0 0.0
    %889 = vmatprep.subr.mxu0 0.0
    %890 = vmatpush2.msra.mxu0 0.0
    %891 = vmatprep.subr.mxu0 0.0
    %892 = vmatpush2.msra.mxu0 0.0
    %893 = vmatprep.subr.mxu0 0.0
    %894 = vmatpush2.msra.mxu0 0.0
    %895 = vmatprep.subr.mxu0 0.0
    %896 = vmatpush2.msra.mxu0 0.0
    %897 = vmatprep.subr.mxu0 0.0
    %898 = vmatpush2.msra.mxu0 0.0
    %899 = vmatprep.subr.mxu0 0.0
    %900 = vmatpush2.msra.mxu0 0.0
    %901 = vmatprep.subr.mxu0 0.0
    %902 = vmatpush2.msra.mxu0 0.0
    %903 = vmatprep.subr.mxu0 0.0
    %904 = vmatpush2.msra.mxu0 0.0
    %905 = vmatprep.subr.mxu0 0.0
    %906 = vmatpush2.msra.mxu0 0.0
    %907 = vmatprep.subr.mxu0 0.0
    %908 = vmatpush2.msra.mxu0 0.0
    %909 = vmatprep.subr.mxu0 0.0
    %910 = vmatpush2.msra.mxu0 0.0
    %911 = vmatprep.mubr.f32.mxu0 0.0
    %v912 = vand.u32 %v640, 4294901760
    %v913 = vsub.f32 %v640, %v912
    %914 = vmatmul.mubr.f32.gmra.mxu0 %v913
    %v915 = vpop.f32.mrf.mxu0
    %v916 = vadd.f32 %v830, %v915
    %v917 = vpop.f32.mrf.mxu0
    %918 = vdwg.mxu0
    %919 = vmatprep.subr.mxu0 0.0
    %920 = vmatpush1.msra.mxu0 0.0
    %921 = vmatprep.subr.mxu0 0.0
    %922 = vmatpush1.msra.mxu0 0.0
    %923 = vmatprep.subr.mxu0 0.0
    %924 = vmatpush1.msra.mxu0 0.0
    %925 = vmatprep.subr.mxu0 0.0
    %926 = vmatpush1.msra.mxu0 0.0
    %927 = vmatprep.subr.mxu0 0.0
    %928 = vmatpush1.msra.mxu0 0.0
    %929 = vmatprep.subr.mxu0 0.0
    %930 = vmatpush1.msra.mxu0 0.0
    %931 = vmatprep.subr.mxu0 0.0
    %932 = vmatpush1.msra.mxu0 0.0
    %933 = vmatprep.subr.mxu0 0.0
    %934 = vmatpush1.msra.mxu0 0.0
    %935 = vmatprep.subr.mxu0 0.0
    %936 = vmatpush1.msra.mxu0 0.0
    %937 = vmatprep.subr.mxu0 0.0
    %v938 = vand.u32 %v643, 4294901760
    %939 = vmatpush1.msra.mxu0 %v938
    %940 = vmatprep.subr.mxu0 0.0
    %v941 = vand.u32 %v105, 4294901760
    %942 = vmatpush1.msra.mxu0 %v941
    %943 = vmatprep.subr.mxu0 0.0
    %v944 = vand.u32 %v104, 4294901760
    %945 = vmatpush1.msra.mxu0 %v944
    %946 = vmatprep.subr.mxu0 0.0
    %v947 = vand.u32 %v103, 4294901760
    %948 = vmatpush1.msra.mxu0 %v947
    %949 = vmatprep.subr.mxu0 0.0
    %v950 = vand.u32 %v102, 4294901760
    %951 = vmatpush1.msra.mxu0 %v950
    %952 = vmatprep.subr.mxu0 0.0
    %v953 = vand.u32 %v101, 4294901760
    %954 = vmatpush1.msra.mxu0 %v953
    %955 = vmatprep.subr.mxu0 0.0
    %v956 = vand.u32 %v100, 4294901760
    %957 = vmatpush1.msra.mxu0 %v956
    %958 = vmatprep.subr.mxu0 0.0
    %959 = vmatpush2.msra.mxu0 0.0
    %960 = vmatprep.subr.mxu0 0.0
    %961 = vmatpush2.msra.mxu0 0.0
    %962 = vmatprep.subr.mxu0 0.0
    %963 = vmatpush2.msra.mxu0 0.0
    %964 = vmatprep.subr.mxu0 0.0
    %965 = vmatpush2.msra.mxu0 0.0
    %966 = vmatprep.subr.mxu0 0.0
    %967 = vmatpush2.msra.mxu0 0.0
    %968 = vmatprep.subr.mxu0 0.0
    %969 = vmatpush2.msra.mxu0 0.0
    %970 = vmatprep.subr.mxu0 0.0
    %971 = vmatpush2.msra.mxu0 0.0
    %972 = vmatprep.subr.mxu0 0.0
    %973 = vmatpush2.msra.mxu0 0.0
    %974 = vmatprep.subr.mxu0 0.0
    %975 = vmatpush2.msra.mxu0 0.0
    %976 = vmatprep.subr.mxu0 0.0
    %977 = vmatpush2.msra.mxu0 0.0
    %978 = vmatprep.subr.mxu0 0.0
    %979 = vmatpush2.msra.mxu0 0.0
    %980 = vmatprep.subr.mxu0 0.0
    %981 = vmatpush2.msra.mxu0 0.0
    %982 = vmatprep.subr.mxu0 0.0
    %983 = vmatpush2.msra.mxu0 0.0
    %984 = vmatprep.subr.mxu0 0.0
    %985 = vmatpush2.msra.mxu0 0.0
    %986 = vmatprep.subr.mxu0 0.0
    %987 = vmatpush2.msra.mxu0 0.0
    %988 = vmatprep.subr.mxu0 0.0
    %989 = vmatpush2.msra.mxu0 0.0
    %990 = vmatprep.mubr.f32.mxu0 0.0
    %v991 = vand.u32 %v640, 4294901760
    %v992 = vsub.f32 %v640, %v991
    %v993 = vand.u32 %v992, 4294901760
    %994 = vmatmul.mubr.f32.gmra.mxu0 %v993
    %v995 = vpop.f32.mrf.mxu0
    %v996 = vadd.f32 %v916, %v995
    %v997 = vpop.f32.mrf.mxu0
    %998 = vdwg.mxu0
    %999 = vmatprep.subr.mxu0 0.0
    %1000 = vmatpush1.msra.mxu0 0.0
    %1001 = vmatprep.subr.mxu0 0.0
    %1002 = vmatpush1.msra.mxu0 0.0
    %1003 = vmatprep.subr.mxu0 0.0
    %1004 = vmatpush1.msra.mxu0 0.0
    %1005 = vmatprep.subr.mxu0 0.0
    %1006 = vmatpush1.msra.mxu0 0.0
    %1007 = vmatprep.subr.mxu0 0.0
    %1008 = vmatpush1.msra.mxu0 0.0
    %1009 = vmatprep.subr.mxu0 0.0
    %1010 = vmatpush1.msra.mxu0 0.0
    %1011 = vmatprep.subr.mxu0 0.0
    %1012 = vmatpush1.msra.mxu0 0.0
    %1013 = vmatprep.subr.mxu0 0.0
    %1014 = vmatpush1.msra.mxu0 0.0
    %1015 = vmatprep.subr.mxu0 0.0
    %1016 = vmatpush1.msra.mxu0 0.0
    %1017 = vmatprep.subr.mxu0 0.0
    %v1018 = vand.u32 %v643, 4294901760
    %v1019 = vsub.f32 %v643, %v1018
    %v1020 = vand.u32 %v1019, 4294901760
    %1021 = vmatpush1.msra.mxu0 %v1020
    %1022 = vmatprep.subr.mxu0 0.0
    %v1023 = vand.u32 %v105, 4294901760
    %v1024 = vsub.f32 %v105, %v1023
    %v1025 = vand.u32 %v1024, 4294901760
    %1026 = vmatpush1.msra.mxu0 %v1025
    %1027 = vmatprep.subr.mxu0 0.0
    %v1028 = vand.u32 %v104, 4294901760
    %v1029 = vsub.f32 %v104, %v1028
    %v1030 = vand.u32 %v1029, 4294901760
    %1031 = vmatpush1.msra.mxu0 %v1030
    %1032 = vmatprep.subr.mxu0 0.0
    %v1033 = vand.u32 %v103, 4294901760
    %v1034 = vsub.f32 %v103, %v1033
    %v1035 = vand.u32 %v1034, 4294901760
    %1036 = vmatpush1.msra.mxu0 %v1035
    %1037 = vmatprep.subr.mxu0 0.0
    %v1038 = vand.u32 %v102, 4294901760
    %v1039 = vsub.f32 %v102, %v1038
    %v1040 = vand.u32 %v1039, 4294901760
    %1041 = vmatpush1.msra.mxu0 %v1040
    %1042 = vmatprep.subr.mxu0 0.0
    %v1043 = vand.u32 %v101, 4294901760
    %v1044 = vsub.f32 %v101, %v1043
    %v1045 = vand.u32 %v1044, 4294901760
    %1046 = vmatpush1.msra.mxu0 %v1045
    %1047 = vmatprep.subr.mxu0 0.0
    %v1048 = vand.u32 %v100, 4294901760
    %v1049 = vsub.f32 %v100, %v1048
    %v1050 = vand.u32 %v1049, 4294901760
    %1051 = vmatpush1.msra.mxu0 %v1050
    %1052 = vmatprep.subr.mxu0 0.0
    %1053 = vmatpush2.msra.mxu0 0.0
    %1054 = vmatprep.subr.mxu0 0.0
    %1055 = vmatpush2.msra.mxu0 0.0
    %1056 = vmatprep.subr.mxu0 0.0
    %1057 = vmatpush2.msra.mxu0 0.0
    %1058 = vmatprep.subr.mxu0 0.0
    %1059 = vmatpush2.msra.mxu0 0.0
    %1060 = vmatprep.subr.mxu0 0.0
    %1061 = vmatpush2.msra.mxu0 0.0
    %1062 = vmatprep.subr.mxu0 0.0
    %1063 = vmatpush2.msra.mxu0 0.0
    %1064 = vmatprep.subr.mxu0 0.0
    %1065 = vmatpush2.msra.mxu0 0.0
    %1066 = vmatprep.subr.mxu0 0.0
    %1067 = vmatpush2.msra.mxu0 0.0
    %1068 = vmatprep.subr.mxu0 0.0
    %1069 = vmatpush2.msra.mxu0 0.0
    %1070 = vmatprep.subr.mxu0 0.0
    %1071 = vmatpush2.msra.mxu0 0.0
    %1072 = vmatprep.subr.mxu0 0.0
    %1073 = vmatpush2.msra.mxu0 0.0
    %1074 = vmatprep.subr.mxu0 0.0
    %1075 = vmatpush2.msra.mxu0 0.0
    %1076 = vmatprep.subr.mxu0 0.0
    %1077 = vmatpush2.msra.mxu0 0.0
    %1078 = vmatprep.subr.mxu0 0.0
    %1079 = vmatpush2.msra.mxu0 0.0
    %1080 = vmatprep.subr.mxu0 0.0
    %1081 = vmatpush2.msra.mxu0 0.0
    %1082 = vmatprep.subr.mxu0 0.0
    %1083 = vmatpush2.msra.mxu0 0.0
    %1084 = vmatprep.mubr.f32.mxu0 0.0
    %v1085 = vand.u32 %v640, 4294901760
    %1086 = vmatmul.mubr.f32.gmra.mxu0 %v1085
    %v1087 = vpop.f32.mrf.mxu0
    %v1088 = vadd.f32 %v996, %v1087
    %v1089 = vpop.f32.mrf.mxu0
    %1090 = vdwg.mxu0
    %1091 = vmatprep.subr.mxu0 0.0
    %1092 = vmatpush1.msra.mxu0 0.0
    %1093 = vmatprep.subr.mxu0 0.0
    %1094 = vmatpush1.msra.mxu0 0.0
    %1095 = vmatprep.subr.mxu0 0.0
    %1096 = vmatpush1.msra.mxu0 0.0
    %1097 = vmatprep.subr.mxu0 0.0
    %1098 = vmatpush1.msra.mxu0 0.0
    %1099 = vmatprep.subr.mxu0 0.0
    %1100 = vmatpush1.msra.mxu0 0.0
    %1101 = vmatprep.subr.mxu0 0.0
    %1102 = vmatpush1.msra.mxu0 0.0
    %1103 = vmatprep.subr.mxu0 0.0
    %1104 = vmatpush1.msra.mxu0 0.0
    %1105 = vmatprep.subr.mxu0 0.0
    %1106 = vmatpush1.msra.mxu0 0.0
    %1107 = vmatprep.subr.mxu0 0.0
    %1108 = vmatpush1.msra.mxu0 0.0
    %1109 = vmatprep.subr.mxu0 0.0
    %v1110 = vand.u32 %v643, 4294901760
    %1111 = vmatpush1.msra.mxu0 %v1110
    %1112 = vmatprep.subr.mxu0 0.0
    %v1113 = vand.u32 %v105, 4294901760
    %1114 = vmatpush1.msra.mxu0 %v1113
    %1115 = vmatprep.subr.mxu0 0.0
    %v1116 = vand.u32 %v104, 4294901760
    %1117 = vmatpush1.msra.mxu0 %v1116
    %1118 = vmatprep.subr.mxu0 0.0
    %v1119 = vand.u32 %v103, 4294901760
    %1120 = vmatpush1.msra.mxu0 %v1119
    %1121 = vmatprep.subr.mxu0 0.0
    %v1122 = vand.u32 %v102, 4294901760
    %1123 = vmatpush1.msra.mxu0 %v1122
    %1124 = vmatprep.subr.mxu0 0.0
    %v1125 = vand.u32 %v101, 4294901760
    %1126 = vmatpush1.msra.mxu0 %v1125
    %1127 = vmatprep.subr.mxu0 0.0
    %v1128 = vand.u32 %v100, 4294901760
    %1129 = vmatpush1.msra.mxu0 %v1128
    %1130 = vmatprep.subr.mxu0 0.0
    %1131 = vmatpush2.msra.mxu0 0.0
    %1132 = vmatprep.subr.mxu0 0.0
    %1133 = vmatpush2.msra.mxu0 0.0
    %1134 = vmatprep.subr.mxu0 0.0
    %1135 = vmatpush2.msra.mxu0 0.0
    %1136 = vmatprep.subr.mxu0 0.0
    %1137 = vmatpush2.msra.mxu0 0.0
    %1138 = vmatprep.subr.mxu0 0.0
    %1139 = vmatpush2.msra.mxu0 0.0
    %1140 = vmatprep.subr.mxu0 0.0
    %1141 = vmatpush2.msra.mxu0 0.0
    %1142 = vmatprep.subr.mxu0 0.0
    %1143 = vmatpush2.msra.mxu0 0.0
    %1144 = vmatprep.subr.mxu0 0.0
    %1145 = vmatpush2.msra.mxu0 0.0
    %1146 = vmatprep.subr.mxu0 0.0
    %1147 = vmatpush2.msra.mxu0 0.0
    %1148 = vmatprep.subr.mxu0 0.0
    %1149 = vmatpush2.msra.mxu0 0.0
    %1150 = vmatprep.subr.mxu0 0.0
    %1151 = vmatpush2.msra.mxu0 0.0
    %1152 = vmatprep.subr.mxu0 0.0
    %1153 = vmatpush2.msra.mxu0 0.0
    %1154 = vmatprep.subr.mxu0 0.0
    %1155 = vmatpush2.msra.mxu0 0.0
    %1156 = vmatprep.subr.mxu0 0.0
    %1157 = vmatpush2.msra.mxu0 0.0
    %1158 = vmatprep.subr.mxu0 0.0
    %1159 = vmatpush2.msra.mxu0 0.0
    %1160 = vmatprep.subr.mxu0 0.0
    %1161 = vmatpush2.msra.mxu0 0.0
    %1162 = vmatprep.mubr.f32.mxu0 0.0
    %v1163 = vand.u32 %v640, 4294901760
    %1164 = vmatmul.mubr.f32.gmra.mxu0 %v1163
    %v1165 = vpop.f32.mrf.mxu0
    %v1166 = vadd.f32 %v1088, %v1165
    %v1167 = vpop.f32.mrf.mxu0
    %1168 = vdwg.mxu0
    %v1170 = vsel %vm107, %v92, 0
    %1172 = vmatprep.subr.mxu0 0.0
    %1173 = vmatpush1.msra.mxu0 0.0
    %1174 = vmatprep.subr.mxu0 0.0
    %1175 = vmatpush1.msra.mxu0 0.0
    %1176 = vmatprep.subr.mxu0 0.0
    %1177 = vmatpush1.msra.mxu0 0.0
    %1178 = vmatprep.subr.mxu0 0.0
    %1179 = vmatpush1.msra.mxu0 0.0
    %1180 = vmatprep.subr.mxu0 0.0
    %1181 = vmatpush1.msra.mxu0 0.0
    %1182 = vmatprep.subr.mxu0 0.0
    %1183 = vmatpush1.msra.mxu0 0.0
    %1184 = vmatprep.subr.mxu0 0.0
    %1185 = vmatpush1.msra.mxu0 0.0
    %1186 = vmatprep.subr.mxu0 0.0
    %1187 = vmatpush1.msra.mxu0 0.0
    %1188 = vmatprep.subr.mxu0 0.0
    %1189 = vmatpush1.msra.mxu0 0.0
    %1190 = vmatprep.subr.mxu0 0.0
    %v1191 = vand.u32 %v643, 4294901760
    %1192 = vmatpush1.msra.mxu0 %v1191
    %1193 = vmatprep.subr.mxu0 0.0
    %v1194 = vand.u32 %v105, 4294901760
    %1195 = vmatpush1.msra.mxu0 %v1194
    %1196 = vmatprep.subr.mxu0 0.0
    %v1197 = vand.u32 %v104, 4294901760
    %1198 = vmatpush1.msra.mxu0 %v1197
    %1199 = vmatprep.subr.mxu0 0.0
    %v1200 = vand.u32 %v103, 4294901760
    %1201 = vmatpush1.msra.mxu0 %v1200
    %1202 = vmatprep.subr.mxu0 0.0
    %v1203 = vand.u32 %v102, 4294901760
    %1204 = vmatpush1.msra.mxu0 %v1203
    %1205 = vmatprep.subr.mxu0 0.0
    %v1206 = vand.u32 %v101, 4294901760
    %1207 = vmatpush1.msra.mxu0 %v1206
    %1208 = vmatprep.subr.mxu0 0.0
    %v1209 = vand.u32 %v100, 4294901760
    %1210 = vmatpush1.msra.mxu0 %v1209
    %1211 = vmatprep.subr.mxu0 0.0
    %1212 = vmatpush2.msra.mxu0 0.0
    %1213 = vmatprep.subr.mxu0 0.0
    %1214 = vmatpush2.msra.mxu0 0.0
    %1215 = vmatprep.subr.mxu0 0.0
    %1216 = vmatpush2.msra.mxu0 0.0
    %1217 = vmatprep.subr.mxu0 0.0
    %1218 = vmatpush2.msra.mxu0 0.0
    %1219 = vmatprep.subr.mxu0 0.0
    %1220 = vmatpush2.msra.mxu0 0.0
    %1221 = vmatprep.subr.mxu0 0.0
    %1222 = vmatpush2.msra.mxu0 0.0
    %1223 = vmatprep.subr.mxu0 0.0
    %1224 = vmatpush2.msra.mxu0 0.0
    %1225 = vmatprep.subr.mxu0 0.0
    %1226 = vmatpush2.msra.mxu0 0.0
    %1227 = vmatprep.subr.mxu0 0.0
    %1228 = vmatpush2.msra.mxu0 0.0
    %1229 = vmatprep.subr.mxu0 0.0
    %1230 = vmatpush2.msra.mxu0 0.0
    %1231 = vmatprep.subr.mxu0 0.0
    %1232 = vmatpush2.msra.mxu0 0.0
    %1233 = vmatprep.subr.mxu0 0.0
    %1234 = vmatpush2.msra.mxu0 0.0
    %1235 = vmatprep.subr.mxu0 0.0
    %1236 = vmatpush2.msra.mxu0 0.0
    %1237 = vmatprep.subr.mxu0 0.0
    %1238 = vmatpush2.msra.mxu0 0.0
    %1239 = vmatprep.subr.mxu0 0.0
    %1240 = vmatpush2.msra.mxu0 0.0
    %1241 = vmatprep.subr.mxu0 0.0
    %1242 = vmatpush2.msra.mxu0 0.0
    %1243 = vmatprep.mubr.f32.mxu0 0.0
    %v1244 = vand.u32 %v1170, 4294901760
    %v1245 = vsub.f32 %v1170, %v1244
    %v1246 = vand.u32 %v1245, 4294901760
    %v1247 = vsub.f32 %v1245, %v1246
    %v1248 = vand.u32 %v1247, 4294901760
    %1249 = vmatmul.mubr.f32.gmra.mxu0 %v1248
    %v1250 = vpop.f32.mrf.mxu0
    %v1251 = vadd.f32 0.0, %v1250
    %v1252 = vpop.f32.mrf.mxu0
    %1253 = vdwg.mxu0
    %1254 = vmatprep.subr.mxu0 0.0
    %1255 = vmatpush1.msra.mxu0 0.0
    %1256 = vmatprep.subr.mxu0 0.0
    %1257 = vmatpush1.msra.mxu0 0.0
    %1258 = vmatprep.subr.mxu0 0.0
    %1259 = vmatpush1.msra.mxu0 0.0
    %1260 = vmatprep.subr.mxu0 0.0
    %1261 = vmatpush1.msra.mxu0 0.0
    %1262 = vmatprep.subr.mxu0 0.0
    %1263 = vmatpush1.msra.mxu0 0.0
    %1264 = vmatprep.subr.mxu0 0.0
    %1265 = vmatpush1.msra.mxu0 0.0
    %1266 = vmatprep.subr.mxu0 0.0
    %1267 = vmatpush1.msra.mxu0 0.0
    %1268 = vmatprep.subr.mxu0 0.0
    %1269 = vmatpush1.msra.mxu0 0.0
    %1270 = vmatprep.subr.mxu0 0.0
    %1271 = vmatpush1.msra.mxu0 0.0
    %1272 = vmatprep.subr.mxu0 0.0
    %v1273 = vand.u32 %v643, 4294901760
    %v1274 = vsub.f32 %v643, %v1273
    %v1275 = vand.u32 %v1274, 4294901760
    %v1276 = vsub.f32 %v1274, %v1275
    %v1277 = vand.u32 %v1276, 4294901760
    %1278 = vmatpush1.msra.mxu0 %v1277
    %1279 = vmatprep.subr.mxu0 0.0
    %v1280 = vand.u32 %v105, 4294901760
    %v1281 = vsub.f32 %v105, %v1280
    %v1282 = vand.u32 %v1281, 4294901760
    %v1283 = vsub.f32 %v1281, %v1282
    %v1284 = vand.u32 %v1283, 4294901760
    %1285 = vmatpush1.msra.mxu0 %v1284
    %1286 = vmatprep.subr.mxu0 0.0
    %v1287 = vand.u32 %v104, 4294901760
    %v1288 = vsub.f32 %v104, %v1287
    %v1289 = vand.u32 %v1288, 4294901760
    %v1290 = vsub.f32 %v1288, %v1289
    %v1291 = vand.u32 %v1290, 4294901760
    %1292 = vmatpush1.msra.mxu0 %v1291
    %1293 = vmatprep.subr.mxu0 0.0
    %v1294 = vand.u32 %v103, 4294901760
    %v1295 = vsub.f32 %v103, %v1294
    %v1296 = vand.u32 %v1295, 4294901760
    %v1297 = vsub.f32 %v1295, %v1296
    %v1298 = vand.u32 %v1297, 4294901760
    %1299 = vmatpush1.msra.mxu0 %v1298
    %1300 = vmatprep.subr.mxu0 0.0
    %v1301 = vand.u32 %v102, 4294901760
    %v1302 = vsub.f32 %v102, %v1301
    %v1303 = vand.u32 %v1302, 4294901760
    %v1304 = vsub.f32 %v1302, %v1303
    %v1305 = vand.u32 %v1304, 4294901760
    %1306 = vmatpush1.msra.mxu0 %v1305
    %1307 = vmatprep.subr.mxu0 0.0
    %v1308 = vand.u32 %v101, 4294901760
    %v1309 = vsub.f32 %v101, %v1308
    %v1310 = vand.u32 %v1309, 4294901760
    %v1311 = vsub.f32 %v1309, %v1310
    %v1312 = vand.u32 %v1311, 4294901760
    %1313 = vmatpush1.msra.mxu0 %v1312
    %1314 = vmatprep.subr.mxu0 0.0
    %v1315 = vand.u32 %v100, 4294901760
    %v1316 = vsub.f32 %v100, %v1315
    %v1317 = vand.u32 %v1316, 4294901760
    %v1318 = vsub.f32 %v1316, %v1317
    %v1319 = vand.u32 %v1318, 4294901760
    %1320 = vmatpush1.msra.mxu0 %v1319
    %1321 = vmatprep.subr.mxu0 0.0
    %1322 = vmatpush2.msra.mxu0 0.0
    %1323 = vmatprep.subr.mxu0 0.0
    %1324 = vmatpush2.msra.mxu0 0.0
    %1325 = vmatprep.subr.mxu0 0.0
    %1326 = vmatpush2.msra.mxu0 0.0
    %1327 = vmatprep.subr.mxu0 0.0
    %1328 = vmatpush2.msra.mxu0 0.0
    %1329 = vmatprep.subr.mxu0 0.0
    %1330 = vmatpush2.msra.mxu0 0.0
    %1331 = vmatprep.subr.mxu0 0.0
    %1332 = vmatpush2.msra.mxu0 0.0
    %1333 = vmatprep.subr.mxu0 0.0
    %1334 = vmatpush2.msra.mxu0 0.0
    %1335 = vmatprep.subr.mxu0 0.0
    %1336 = vmatpush2.msra.mxu0 0.0
    %1337 = vmatprep.subr.mxu0 0.0
    %1338 = vmatpush2.msra.mxu0 0.0
    %1339 = vmatprep.subr.mxu0 0.0
    %1340 = vmatpush2.msra.mxu0 0.0
    %1341 = vmatprep.subr.mxu0 0.0
    %1342 = vmatpush2.msra.mxu0 0.0
    %1343 = vmatprep.subr.mxu0 0.0
    %1344 = vmatpush2.msra.mxu0 0.0
    %1345 = vmatprep.subr.mxu0 0.0
    %1346 = vmatpush2.msra.mxu0 0.0
    %1347 = vmatprep.subr.mxu0 0.0
    %1348 = vmatpush2.msra.mxu0 0.0
    %1349 = vmatprep.subr.mxu0 0.0
    %1350 = vmatpush2.msra.mxu0 0.0
    %1351 = vmatprep.subr.mxu0 0.0
    %1352 = vmatpush2.msra.mxu0 0.0
    %1353 = vmatprep.mubr.f32.mxu0 0.0
    %v1354 = vand.u32 %v1170, 4294901760
    %1355 = vmatmul.mubr.f32.gmra.mxu0 %v1354
    %v1356 = vpop.f32.mrf.mxu0
    %v1357 = vadd.f32 %v1251, %v1356
    %v1358 = vpop.f32.mrf.mxu0
    %1359 = vdwg.mxu0
    %1360 = vmatprep.subr.mxu0 0.0
    %1361 = vmatpush1.msra.mxu0 0.0
    %1362 = vmatprep.subr.mxu0 0.0
    %1363 = vmatpush1.msra.mxu0 0.0
    %1364 = vmatprep.subr.mxu0 0.0
    %1365 = vmatpush1.msra.mxu0 0.0
    %1366 = vmatprep.subr.mxu0 0.0
    %1367 = vmatpush1.msra.mxu0 0.0
    %1368 = vmatprep.subr.mxu0 0.0
    %1369 = vmatpush1.msra.mxu0 0.0
    %1370 = vmatprep.subr.mxu0 0.0
    %1371 = vmatpush1.msra.mxu0 0.0
    %1372 = vmatprep.subr.mxu0 0.0
    %1373 = vmatpush1.msra.mxu0 0.0
    %1374 = vmatprep.subr.mxu0 0.0
    %1375 = vmatpush1.msra.mxu0 0.0
    %1376 = vmatprep.subr.mxu0 0.0
    %1377 = vmatpush1.msra.mxu0 0.0
    %1378 = vmatprep.subr.mxu0 0.0
    %v1379 = vand.u32 %v643, 4294901760
    %v1380 = vsub.f32 %v643, %v1379
    %1381 = vmatpush1.msra.mxu0 %v1380
    %1382 = vmatprep.subr.mxu0 0.0
    %v1383 = vand.u32 %v105, 4294901760
    %v1384 = vsub.f32 %v105, %v1383
    %1385 = vmatpush1.msra.mxu0 %v1384
    %1386 = vmatprep.subr.mxu0 0.0
    %v1387 = vand.u32 %v104, 4294901760
    %v1388 = vsub.f32 %v104, %v1387
    %1389 = vmatpush1.msra.mxu0 %v1388
    %1390 = vmatprep.subr.mxu0 0.0
    %v1391 = vand.u32 %v103, 4294901760
    %v1392 = vsub.f32 %v103, %v1391
    %1393 = vmatpush1.msra.mxu0 %v1392
    %1394 = vmatprep.subr.mxu0 0.0
    %v1395 = vand.u32 %v102, 4294901760
    %v1396 = vsub.f32 %v102, %v1395
    %1397 = vmatpush1.msra.mxu0 %v1396
    %1398 = vmatprep.subr.mxu0 0.0
    %v1399 = vand.u32 %v101, 4294901760
    %v1400 = vsub.f32 %v101, %v1399
    %1401 = vmatpush1.msra.mxu0 %v1400
    %1402 = vmatprep.subr.mxu0 0.0
    %v1403 = vand.u32 %v100, 4294901760
    %v1404 = vsub.f32 %v100, %v1403
    %1405 = vmatpush1.msra.mxu0 %v1404
    %1406 = vmatprep.subr.mxu0 0.0
    %1407 = vmatpush2.msra.mxu0 0.0
    %1408 = vmatprep.subr.mxu0 0.0
    %1409 = vmatpush2.msra.mxu0 0.0
    %1410 = vmatprep.subr.mxu0 0.0
    %1411 = vmatpush2.msra.mxu0 0.0
    %1412 = vmatprep.subr.mxu0 0.0
    %1413 = vmatpush2.msra.mxu0 0.0
    %1414 = vmatprep.subr.mxu0 0.0
    %1415 = vmatpush2.msra.mxu0 0.0
    %1416 = vmatprep.subr.mxu0 0.0
    %1417 = vmatpush2.msra.mxu0 0.0
    %1418 = vmatprep.subr.mxu0 0.0
    %1419 = vmatpush2.msra.mxu0 0.0
    %1420 = vmatprep.subr.mxu0 0.0
    %1421 = vmatpush2.msra.mxu0 0.0
    %1422 = vmatprep.subr.mxu0 0.0
    %1423 = vmatpush2.msra.mxu0 0.0
    %1424 = vmatprep.subr.mxu0 0.0
    %1425 = vmatpush2.msra.mxu0 0.0
    %1426 = vmatprep.subr.mxu0 0.0
    %1427 = vmatpush2.msra.mxu0 0.0
    %1428 = vmatprep.subr.mxu0 0.0
    %1429 = vmatpush2.msra.mxu0 0.0
    %1430 = vmatprep.subr.mxu0 0.0
    %1431 = vmatpush2.msra.mxu0 0.0
    %1432 = vmatprep.subr.mxu0 0.0
    %1433 = vmatpush2.msra.mxu0 0.0
    %1434 = vmatprep.subr.mxu0 0.0
    %1435 = vmatpush2.msra.mxu0 0.0
    %1436 = vmatprep.subr.mxu0 0.0
    %1437 = vmatpush2.msra.mxu0 0.0
    %1438 = vmatprep.mubr.f32.mxu0 0.0
    %v1439 = vand.u32 %v1170, 4294901760
    %v1440 = vsub.f32 %v1170, %v1439
    %1441 = vmatmul.mubr.f32.gmra.mxu0 %v1440
    %v1442 = vpop.f32.mrf.mxu0
    %v1443 = vadd.f32 %v1357, %v1442
    %v1444 = vpop.f32.mrf.mxu0
    %1445 = vdwg.mxu0
    %1446 = vmatprep.subr.mxu0 0.0
    %1447 = vmatpush1.msra.mxu0 0.0
    %1448 = vmatprep.subr.mxu0 0.0
    %1449 = vmatpush1.msra.mxu0 0.0
    %1450 = vmatprep.subr.mxu0 0.0
    %1451 = vmatpush1.msra.mxu0 0.0
    %1452 = vmatprep.subr.mxu0 0.0
    %1453 = vmatpush1.msra.mxu0 0.0
    %1454 = vmatprep.subr.mxu0 0.0
    %1455 = vmatpush1.msra.mxu0 0.0
    %1456 = vmatprep.subr.mxu0 0.0
    %1457 = vmatpush1.msra.mxu0 0.0
    %1458 = vmatprep.subr.mxu0 0.0
    %1459 = vmatpush1.msra.mxu0 0.0
    %1460 = vmatprep.subr.mxu0 0.0
    %1461 = vmatpush1.msra.mxu0 0.0
    %1462 = vmatprep.subr.mxu0 0.0
    %1463 = vmatpush1.msra.mxu0 0.0
    %1464 = vmatprep.subr.mxu0 0.0
    %v1465 = vand.u32 %v643, 4294901760
    %1466 = vmatpush1.msra.mxu0 %v1465
    %1467 = vmatprep.subr.mxu0 0.0
    %v1468 = vand.u32 %v105, 4294901760
    %1469 = vmatpush1.msra.mxu0 %v1468
    %1470 = vmatprep.subr.mxu0 0.0
    %v1471 = vand.u32 %v104, 4294901760
    %1472 = vmatpush1.msra.mxu0 %v1471
    %1473 = vmatprep.subr.mxu0 0.0
    %v1474 = vand.u32 %v103, 4294901760
    %1475 = vmatpush1.msra.mxu0 %v1474
    %1476 = vmatprep.subr.mxu0 0.0
    %v1477 = vand.u32 %v102, 4294901760
    %1478 = vmatpush1.msra.mxu0 %v1477
    %1479 = vmatprep.subr.mxu0 0.0
    %v1480 = vand.u32 %v101, 4294901760
    %1481 = vmatpush1.msra.mxu0 %v1480
    %1482 = vmatprep.subr.mxu0 0.0
    %v1483 = vand.u32 %v100, 4294901760
    %1484 = vmatpush1.msra.mxu0 %v1483
    %1485 = vmatprep.subr.mxu0 0.0
    %1486 = vmatpush2.msra.mxu0 0.0
    %1487 = vmatprep.subr.mxu0 0.0
    %1488 = vmatpush2.msra.mxu0 0.0
    %1489 = vmatprep.subr.mxu0 0.0
    %1490 = vmatpush2.msra.mxu0 0.0
    %1491 = vmatprep.subr.mxu0 0.0
    %1492 = vmatpush2.msra.mxu0 0.0
    %1493 = vmatprep.subr.mxu0 0.0
    %1494 = vmatpush2.msra.mxu0 0.0
    %1495 = vmatprep.subr.mxu0 0.0
    %1496 = vmatpush2.msra.mxu0 0.0
    %1497 = vmatprep.subr.mxu0 0.0
    %1498 = vmatpush2.msra.mxu0 0.0
    %1499 = vmatprep.subr.mxu0 0.0
    %1500 = vmatpush2.msra.mxu0 0.0
    %1501 = vmatprep.subr.mxu0 0.0
    %1502 = vmatpush2.msra.mxu0 0.0
    %1503 = vmatprep.subr.mxu0 0.0
    %1504 = vmatpush2.msra.mxu0 0.0
    %1505 = vmatprep.subr.mxu0 0.0
    %1506 = vmatpush2.msra.mxu0 0.0
    %1507 = vmatprep.subr.mxu0 0.0
    %1508 = vmatpush2.msra.mxu0 0.0
    %1509 = vmatprep.subr.mxu0 0.0
    %1510 = vmatpush2.msra.mxu0 0.0
    %1511 = vmatprep.subr.mxu0 0.0
    %1512 = vmatpush2.msra.mxu0 0.0
    %1513 = vmatprep.subr.mxu0 0.0
    %1514 = vmatpush2.msra.mxu0 0.0
    %1515 = vmatprep.subr.mxu0 0.0
    %1516 = vmatpush2.msra.mxu0 0.0
    %1517 = vmatprep.mubr.f32.mxu0 0.0
    %v1518 = vand.u32 %v1170, 4294901760
    %v1519 = vsub.f32 %v1170, %v1518
    %v1520 = vand.u32 %v1519, 4294901760
    %1521 = vmatmul.mubr.f32.gmra.mxu0 %v1520
    %v1522 = vpop.f32.mrf.mxu0
    %v1523 = vadd.f32 %v1443, %v1522
    %v1524 = vpop.f32.mrf.mxu0
    %1525 = vdwg.mxu0
    %1526 = vmatprep.subr.mxu0 0.0
    %1527 = vmatpush1.msra.mxu0 0.0
    %1528 = vmatprep.subr.mxu0 0.0
    %1529 = vmatpush1.msra.mxu0 0.0
    %1530 = vmatprep.subr.mxu0 0.0
    %1531 = vmatpush1.msra.mxu0 0.0
    %1532 = vmatprep.subr.mxu0 0.0
    %1533 = vmatpush1.msra.mxu0 0.0
    %1534 = vmatprep.subr.mxu0 0.0
    %1535 = vmatpush1.msra.mxu0 0.0
    %1536 = vmatprep.subr.mxu0 0.0
    %1537 = vmatpush1.msra.mxu0 0.0
    %1538 = vmatprep.subr.mxu0 0.0
    %1539 = vmatpush1.msra.mxu0 0.0
    %1540 = vmatprep.subr.mxu0 0.0
    %1541 = vmatpush1.msra.mxu0 0.0
    %1542 = vmatprep.subr.mxu0 0.0
    %1543 = vmatpush1.msra.mxu0 0.0
    %1544 = vmatprep.subr.mxu0 0.0
    %v1545 = vand.u32 %v643, 4294901760
    %v1546 = vsub.f32 %v643, %v1545
    %v1547 = vand.u32 %v1546, 4294901760
    %1548 = vmatpush1.msra.mxu0 %v1547
    %1549 = vmatprep.subr.mxu0 0.0
    %v1550 = vand.u32 %v105, 4294901760
    %v1551 = vsub.f32 %v105, %v1550
    %v1552 = vand.u32 %v1551, 4294901760
    %1553 = vmatpush1.msra.mxu0 %v1552
    %1554 = vmatprep.subr.mxu0 0.0
    %v1555 = vand.u32 %v104, 4294901760
    %v1556 = vsub.f32 %v104, %v1555
    %v1557 = vand.u32 %v1556, 4294901760
    %1558 = vmatpush1.msra.mxu0 %v1557
    %1559 = vmatprep.subr.mxu0 0.0
    %v1560 = vand.u32 %v103, 4294901760
    %v1561 = vsub.f32 %v103, %v1560
    %v1562 = vand.u32 %v1561, 4294901760
    %1563 = vmatpush1.msra.mxu0 %v1562
    %1564 = vmatprep.subr.mxu0 0.0
    %v1565 = vand.u32 %v102, 4294901760
    %v1566 = vsub.f32 %v102, %v1565
    %v1567 = vand.u32 %v1566, 4294901760
    %1568 = vmatpush1.msra.mxu0 %v1567
    %1569 = vmatprep.subr.mxu0 0.0
    %v1570 = vand.u32 %v101, 4294901760
    %v1571 = vsub.f32 %v101, %v1570
    %v1572 = vand.u32 %v1571, 4294901760
    %1573 = vmatpush1.msra.mxu0 %v1572
    %1574 = vmatprep.subr.mxu0 0.0
    %v1575 = vand.u32 %v100, 4294901760
    %v1576 = vsub.f32 %v100, %v1575
    %v1577 = vand.u32 %v1576, 4294901760
    %1578 = vmatpush1.msra.mxu0 %v1577
    %1579 = vmatprep.subr.mxu0 0.0
    %1580 = vmatpush2.msra.mxu0 0.0
    %1581 = vmatprep.subr.mxu0 0.0
    %1582 = vmatpush2.msra.mxu0 0.0
    %1583 = vmatprep.subr.mxu0 0.0
    %1584 = vmatpush2.msra.mxu0 0.0
    %1585 = vmatprep.subr.mxu0 0.0
    %1586 = vmatpush2.msra.mxu0 0.0
    %1587 = vmatprep.subr.mxu0 0.0
    %1588 = vmatpush2.msra.mxu0 0.0
    %1589 = vmatprep.subr.mxu0 0.0
    %1590 = vmatpush2.msra.mxu0 0.0
    %1591 = vmatprep.subr.mxu0 0.0
    %1592 = vmatpush2.msra.mxu0 0.0
    %1593 = vmatprep.subr.mxu0 0.0
    %1594 = vmatpush2.msra.mxu0 0.0
    %1595 = vmatprep.subr.mxu0 0.0
    %1596 = vmatpush2.msra.mxu0 0.0
    %1597 = vmatprep.subr.mxu0 0.0
    %1598 = vmatpush2.msra.mxu0 0.0
    %1599 = vmatprep.subr.mxu0 0.0
    %1600 = vmatpush2.msra.mxu0 0.0
    %1601 = vmatprep.subr.mxu0 0.0
    %1602 = vmatpush2.msra.mxu0 0.0
    %1603 = vmatprep.subr.mxu0 0.0
    %1604 = vmatpush2.msra.mxu0 0.0
    %1605 = vmatprep.subr.mxu0 0.0
    %1606 = vmatpush2.msra.mxu0 0.0
    %1607 = vmatprep.subr.mxu0 0.0
    %1608 = vmatpush2.msra.mxu0 0.0
    %1609 = vmatprep.subr.mxu0 0.0
    %1610 = vmatpush2.msra.mxu0 0.0
    %1611 = vmatprep.mubr.f32.mxu0 0.0
    %v1612 = vand.u32 %v1170, 4294901760
    %1613 = vmatmul.mubr.f32.gmra.mxu0 %v1612
    %v1614 = vpop.f32.mrf.mxu0
    %v1615 = vadd.f32 %v1523, %v1614
    %v1616 = vpop.f32.mrf.mxu0
    %1617 = vdwg.mxu0
    %1618 = vmatprep.subr.mxu0 0.0
    %1619 = vmatpush1.msra.mxu0 0.0
    %1620 = vmatprep.subr.mxu0 0.0
    %1621 = vmatpush1.msra.mxu0 0.0
    %1622 = vmatprep.subr.mxu0 0.0
    %1623 = vmatpush1.msra.mxu0 0.0
    %1624 = vmatprep.subr.mxu0 0.0
    %1625 = vmatpush1.msra.mxu0 0.0
    %1626 = vmatprep.subr.mxu0 0.0
    %1627 = vmatpush1.msra.mxu0 0.0
    %1628 = vmatprep.subr.mxu0 0.0
    %1629 = vmatpush1.msra.mxu0 0.0
    %1630 = vmatprep.subr.mxu0 0.0
    %1631 = vmatpush1.msra.mxu0 0.0
    %1632 = vmatprep.subr.mxu0 0.0
    %1633 = vmatpush1.msra.mxu0 0.0
    %1634 = vmatprep.subr.mxu0 0.0
    %1635 = vmatpush1.msra.mxu0 0.0
    %1636 = vmatprep.subr.mxu0 0.0
    %v1637 = vand.u32 %v643, 4294901760
    %1638 = vmatpush1.msra.mxu0 %v1637
    %1639 = vmatprep.subr.mxu0 0.0
    %v1640 = vand.u32 %v105, 4294901760
    %1641 = vmatpush1.msra.mxu0 %v1640
    %1642 = vmatprep.subr.mxu0 0.0
    %v1643 = vand.u32 %v104, 4294901760
    %1644 = vmatpush1.msra.mxu0 %v1643
    %1645 = vmatprep.subr.mxu0 0.0
    %v1646 = vand.u32 %v103, 4294901760
    %1647 = vmatpush1.msra.mxu0 %v1646
    %1648 = vmatprep.subr.mxu0 0.0
    %v1649 = vand.u32 %v102, 4294901760
    %1650 = vmatpush1.msra.mxu0 %v1649
    %1651 = vmatprep.subr.mxu0 0.0
    %v1652 = vand.u32 %v101, 4294901760
    %1653 = vmatpush1.msra.mxu0 %v1652
    %1654 = vmatprep.subr.mxu0 0.0
    %v1655 = vand.u32 %v100, 4294901760
    %1656 = vmatpush1.msra.mxu0 %v1655
    %1657 = vmatprep.subr.mxu0 0.0
    %1658 = vmatpush2.msra.mxu0 0.0
    %1659 = vmatprep.subr.mxu0 0.0
    %1660 = vmatpush2.msra.mxu0 0.0
    %1661 = vmatprep.subr.mxu0 0.0
    %1662 = vmatpush2.msra.mxu0 0.0
    %1663 = vmatprep.subr.mxu0 0.0
    %1664 = vmatpush2.msra.mxu0 0.0
    %1665 = vmatprep.subr.mxu0 0.0
    %1666 = vmatpush2.msra.mxu0 0.0
    %1667 = vmatprep.subr.mxu0 0.0
    %1668 = vmatpush2.msra.mxu0 0.0
    %1669 = vmatprep.subr.mxu0 0.0
    %1670 = vmatpush2.msra.mxu0 0.0
    %1671 = vmatprep.subr.mxu0 0.0
    %1672 = vmatpush2.msra.mxu0 0.0
    %1673 = vmatprep.subr.mxu0 0.0
    %1674 = vmatpush2.msra.mxu0 0.0
    %1675 = vmatprep.subr.mxu0 0.0
    %1676 = vmatpush2.msra.mxu0 0.0
    %1677 = vmatprep.subr.mxu0 0.0
    %1678 = vmatpush2.msra.mxu0 0.0
    %1679 = vmatprep.subr.mxu0 0.0
    %1680 = vmatpush2.msra.mxu0 0.0
    %1681 = vmatprep.subr.mxu0 0.0
    %1682 = vmatpush2.msra.mxu0 0.0
    %1683 = vmatprep.subr.mxu0 0.0
    %1684 = vmatpush2.msra.mxu0 0.0
    %1685 = vmatprep.subr.mxu0 0.0
    %1686 = vmatpush2.msra.mxu0 0.0
    %1687 = vmatprep.subr.mxu0 0.0
    %1688 = vmatpush2.msra.mxu0 0.0
    %1689 = vmatprep.mubr.f32.mxu0 0.0
    %v1690 = vand.u32 %v1170, 4294901760
    %1691 = vmatmul.mubr.f32.gmra.mxu0 %v1690
    %v1692 = vpop.f32.mrf.mxu0
    %v1693 = vadd.f32 %v1615, %v1692
    %v1694 = vpop.f32.mrf.mxu0
    %1695 = vdwg.mxu0
    %v1696 = vmul.f32 %v1166, %v636
    %vm1697 = vcmask 261120
    %v1698 = vsel %vm1697, %v1696, 0.0
    %1699 = vadd.xlane.f32.xlu0 %v1698
    %v1700 = vpop.xlane.xlu0 %1699
    %v1701 = vmul.f32 %v1693, %v636
    %v1702 = vsel %vm1697, %v1701, 0.0
    %1703 = vadd.xlane.f32.xlu0 %v1702
    %v1704 = vpop.xlane.xlu0 %1703
    %v1705 = vsub.f32 0.0, %v1704
    %v1706 = vmin.f32 %v1700, 0.0
    %v1707 = vand.u32 2147483647, %v1700
    %v1708 = vsub.f32 0.0, %v1707
    %v1709 = vmul.f32 %v1708, 1.442695
    %v1710 = vpow.pop %v1709
    %v1711 = vadd.f32 %v1710, 1.0
    %v1712 = vlog2.pop %v1711
    %v1713 = vmul.f32 %v1712, 0.6931472
    %v1714 = vsub.f32 %v1706, %v1713
    %v1715 = vmin.f32 %v1705, 0.0
    %v1716 = vand.u32 2147483647, %v1705
    %v1717 = vsub.f32 0.0, %v1716
    %v1718 = vmul.f32 %v1717, 1.442695
    %v1719 = vpow.pop %v1718
    %v1720 = vadd.f32 %v1719, 1.0
    %v1721 = vlog2.pop %v1720
    %v1722 = vmul.f32 %v1721, 0.6931472
    %v1723 = vsub.f32 %v1715, %v1722
    %v1724 = vadd.f32 %v1714, %v1723
    %vm1725 = vcmask 7168
    %v1726 = vsel %vm1725, %v1724, 0.0
    %1727 = vadd.xlane.f32.xlu0 %v1726
    %v1728 = vpop.xlane.xlu0 %1727
    %v1729 = vrot.slane %v1728, 4
    %v1730 = vadd.f32 %v1728, %v1729
    %v1731 = vrot.slane %v1730, 2
    %v1732 = vadd.f32 %v1730, %v1731
    %v1733 = vrot.slane %v1732, 1
    %v1734 = vadd.f32 %v1732, %v1733
    %s1735 = vtos %v1734
    %v1736 = vstv %s1735
    %1737 = vst [vmem:[#allocation2] sm:$0xff] %v1736
    // Predicated region
    $region22: #{tpu_custom_call.1} parent=1 // pred_check
      _
    $region23: #{tpu_custom_call.1} parent=1 // pred_check_branch
      %1739 = sbr.rel (0) target = $region25
    $region24: #{tpu_custom_call.1} parent=1 // pred_region
      %s1741 = ssub.s32 128, 128
      %1742 = vsyncadd [#allocation3], %s1741
      %s1744 = sshll.u32 [#allocation2], 4
      %s1745 = int_to_ptr.vmem [resolvable:$true] %s1744
      %1747 = dma.vmem_to_hbm [thread:$0]  %s1745, 128, %s5, [#allocation3]
    $region25: #{tpu_custom_call.1} parent=1 // pred_fallthru
      _
    // Predicated region
    $region26: #{tpu_custom_call.1} parent=1 // pred_check
      _
    $region27: #{tpu_custom_call.1} parent=1 // pred_check_branch
      %1749 = sbr.rel (0) target = $region29
    $region28: #{tpu_custom_call.1} parent=1 // pred_region
      %1750 = dma.done [#allocation3], 128
    $region29: #{tpu_custom_call.1} parent=1 // pred_fallthru
      _
    %1751 = vsyncpa [#allocation3], 1

</llo_original>
